<compile_context>
chip_gen: v7x
topology: tpu7x:2x2x1
jax: 0.10.0
libtpu: 0.0.40
codegen_flags: <defaults>
</compile_context>

<pallas_src>
import math

import jax
import jax.numpy as jnp
from jax.experimental import pallas as pl
from jax.experimental.pallas import tpu as pltpu

_FOLD = 8     # samples folded onto the sublane axis
_LANE = 128   # lane width


def _make_encoder_kernel(x_dim: int, min_deg: int, max_deg: int,
                         use_identity: bool):
    """Builds the Pallas kernel. All constants are Python scalars (literals)."""
    degs = list(range(min_deg, max_deg))
    L = len(degs)
    R = _FOLD * x_dim            # folded rows per feature block
    HALF_PI = 0.5 * math.pi      # Python float -> literal, not a captured const

    def kernel(x_ref, o_ref):
        # x_ref: (8*x_dim, tile_f)   -- samples on lanes + folded on sublanes
        # o_ref: (8*latent_dim, tile_f)
        x = x_ref[...].astype(jnp.float32)

        off = 0
        if use_identity:
            o_ref[0:R, :] = x.astype(o_ref.dtype)
            off = R
        cos_off = off + L * R

        for idx, d in enumerate(degs):
            xb = x * (2.0 ** d)                      # exact power-of-two scale
            s = off + idx * R
            c = cos_off + idx * R
            o_ref[s:s + R, :] = jnp.sin(xb).astype(o_ref.dtype)
            o_ref[c:c + R, :] = jnp.sin(xb + HALF_PI).astype(o_ref.dtype)

    return kernel


def sinusoidal_encoder(x, *, x_dim, min_deg, max_deg, use_identity=True,
                       tile_n=65536, transposed_output=False):
    """Pallas implementation of SinusoidalEncoder.forward.

    Args:
      x: [..., x_dim] array.
      tile_n: samples per grid step, multiple of 1024 (8 sublanes x 128 lanes).
      transposed_output: if True, return the lane-dense [latent_dim, N] layout
        and skip the final transpose (consumers can contract against it).

    Returns:
      [..., latent_dim] (or [latent_dim, N] if transposed_output), where
      latent_dim = (int(use_identity) + 2*(max_deg - min_deg)) * x_dim.
    """
    assert x.shape[-1] == x_dim
    if max_deg == min_deg:
        # Matches the reference: identity flag is ignored in this degenerate case.
        return x
    assert tile_n % (_FOLD * _LANE) == 0, "tile_n must be a multiple of 1024"

    L = max_deg - min_deg
    latent_dim = (int(use_identity) + 2 * L) * x_dim

    lead_shape = x.shape[:-1]
    n = math.prod(lead_shape) if lead_shape else 1

    # Put the big N axis on lanes (cheap: 4*x_dim bytes/sample).
    xt = x.reshape(n, x_dim).T                      # (x_dim, n)

    # Fold 8 samples onto sublanes.  Needs n % 8 == 0; pad at most 7 columns.
    n_p8 = pl.cdiv(n, _FOLD) * _FOLD
    if n_p8 != n:
        xt = jnp.pad(xt, ((0, 0), (0, n_p8 - n)))
    n8 = n_p8 // _FOLD
    x_f = xt.reshape(_FOLD * x_dim, n8)             # (8*x_dim, n8)

    # Tile selection (folded columns per grid step).
    tile_f = tile_n // _FOLD
    if n8 <= _LANE:
        tile_f = n8                                  # single block == full dim
    else:
        # Keep >= 2 grid steps (both v7x TCs busy), lane-aligned tiles.
        half = pl.cdiv(pl.cdiv(n8, 2), _LANE) * _LANE
        tile_f = max(_LANE, min(tile_f, half))
    grid = (pl.cdiv(n8, tile_f),)
    # A partial last block (n8 % tile_f != 0) is fine: OOB reads are garbage we
    # never keep, OOB writes are dropped — the op is purely elementwise.

    in_rows = _FOLD * x_dim
    out_rows = _FOLD * latent_dim
    itemsize = jnp.dtype(x.dtype).itemsize
    block_bytes = (in_rows + out_rows) * tile_f * itemsize
    vmem_limit = int(min(64 * 2**20, max(32 * 2**20, 2 * block_bytes + 4 * 2**20)))

    kernel = _make_encoder_kernel(x_dim, min_deg, max_deg, use_identity)

    cost = pl.CostEstimate(
        flops=2 * L * x_dim * n_p8,
        transcendentals=2 * L * x_dim * n_p8,
        bytes_accessed=(x_dim + latent_dim) * n_p8 * itemsize,
    )

    out_f = pl.pallas_call(
        kernel,
        out_shape=jax.ShapeDtypeStruct((out_rows, n8), x.dtype),
        grid_spec=pltpu.PrefetchScalarGridSpec(
            num_scalar_prefetch=0,
            grid=grid,
            in_specs=[pl.BlockSpec((in_rows, tile_f), lambda i: (0, i))],
            out_specs=pl.BlockSpec((out_rows, tile_f), lambda i: (0, i)),
        ),
        compiler_params=pltpu.CompilerParams(
            dimension_semantics=("parallel",),
            vmem_limit_bytes=vmem_limit,
        ),
        cost_estimate=cost,
    )(x_f)

    # Undo the fold: (8*latent_dim, n8) -> (latent_dim, 8*n8), drop pad columns.
    out_t = out_f.reshape(latent_dim, n_p8)
    if n_p8 != n:
        out_t = out_t[:, :n]
    if transposed_output:
        return out_t                                   # (latent_dim, N)
    return out_t.T.reshape(*lead_shape, latent_dim)    # [..., latent_dim]


def sinusoidal_encoder_ref(x, *, min_deg, max_deg, use_identity=True):
    """Pure-JAX reference mirroring the PyTorch forward."""
    if max_deg == min_deg:
        return x
    scales = jnp.asarray([2.0 ** i for i in range(min_deg, max_deg)],
                         dtype=x.dtype)
    xb = (x[..., None, :] * scales[:, None]).reshape(
        *x.shape[:-1], (max_deg - min_deg) * x.shape[-1])
    latent = jnp.sin(jnp.concatenate([xb, xb + 0.5 * math.pi], axis=-1))
    if use_identity:
        latent = jnp.concatenate([x, latent], axis=-1)
    return latent


if __name__ == "__main__":
    key = jax.random.PRNGKey(0)

    # Test 1: typical NeRF config, small ragged N (single block path).
    x_dim, min_deg, max_deg, use_identity = 3, 0, 4, True
    x = jax.random.normal(key, (2, 100, x_dim), dtype=jnp.float32)
    out = sinusoidal_encoder(x, x_dim=x_dim, min_deg=min_deg, max_deg=max_deg,
                             use_identity=use_identity)
    out = jax.block_until_ready(out)
    ref = sinusoidal_encoder_ref(x, min_deg=min_deg, max_deg=max_deg,
                                 use_identity=use_identity)
    latent_dim = (int(use_identity) + 2 * (max_deg - min_deg)) * x_dim
    assert out.shape == (2, 100, latent_dim), out.shape
    assert jnp.allclose(out, ref, atol=1e-4, rtol=1e-4), "mismatch (test 1)"

    # Test 2: multiple grid steps, exact tiling, no identity term.
    x2 = jax.random.normal(jax.random.PRNGKey(1), (4, 512, x_dim),
                           dtype=jnp.float32)
    out2 = sinusoidal_encoder(x2, x_dim=x_dim, min_deg=min_deg,
                              max_deg=max_deg, use_identity=False,
                              tile_n=1024)
    out2 = jax.block_until_ready(out2)
    ref2 = sinusoidal_encoder_ref(x2, min_deg=min_deg, max_deg=max_deg,
                                  use_identity=False)
    assert out2.shape == (4, 512, 2 * (max_deg - min_deg) * x_dim), out2.shape
    assert jnp.allclose(out2, ref2, atol=1e-4, rtol=1e-4), "mismatch (test 2)"

    # Test 3: ragged N with a partial last block (no full-array pad path),
    # nonzero min_deg, identity on.
    x3 = jax.random.normal(jax.random.PRNGKey(2), (5, 500, x_dim),
                           dtype=jnp.float32)
    out3 = sinusoidal_encoder(x3, x_dim=x_dim, min_deg=1, max_deg=5,
                              use_identity=True, tile_n=1024)
    out3 = jax.block_until_ready(out3)
    ref3 = sinusoidal_encoder_ref(x3, min_deg=1, max_deg=5, use_identity=True)
    assert out3.shape == (5, 500, (1 + 2 * 4) * x_dim), out3.shape
    assert jnp.allclose(out3, ref3, atol=1e-4, rtol=1e-4), "mismatch (test 3)"

    print("KERNEL_OK")
</pallas_src>

<mosaic_0001>
module attributes {stable_mosaic.version = 11 : i64} {
  func.func @kernel(%arg0: i32, %arg1: memref<24x25xf32, #tpu.memory_space<vmem>>, %arg2: memref<216x25xf32, #tpu.memory_space<vmem>>) attributes {dimension_semantics = [#tpu.dimension_semantics<parallel>], iteration_bounds = array<i64: 1>, scalar_prefetch = 0 : i64, scratch_operands = 0 : i64, tpu.core_type = #tpu.core_type<tc>, window_params = [{transform_indices = @transform_0, window_bounds = array<i64: 24, 25>}, {transform_indices = @transform_1, window_bounds = array<i64: 216, 25>}]} {
    %c0 = arith.constant 0 : index
    %c0_0 = arith.constant 0 : index
    %0 = vector.load %arg1[%c0, %c0_0] : memref<24x25xf32, #tpu.memory_space<vmem>>, vector<24x25xf32>
    %c0_1 = arith.constant 0 : index
    %c0_2 = arith.constant 0 : index
    %1 = vector.load %arg2[%c0_1, %c0_2] : memref<216x25xf32, #tpu.memory_space<vmem>>, vector<24x25xf32>
    tpu.vector_store %arg2[%c0_1, %c0_2], %0 {strides = array<i32>} : memref<216x25xf32, #tpu.memory_space<vmem>>, vector<24x25xf32>,
    %cst = arith.constant 1.000000e+00 : f32
    %2 = vector.broadcast %cst : f32 to vector<24x25xf32>
    %3 = arith.mulf %0, %2 : vector<24x25xf32>
    %4 = math.sin %3 : vector<24x25xf32>
    %c24 = arith.constant 24 : index
    %c0_3 = arith.constant 0 : index
    %5 = vector.load %arg2[%c24, %c0_3] : memref<216x25xf32, #tpu.memory_space<vmem>>, vector<24x25xf32>
    tpu.vector_store %arg2[%c24, %c0_3], %4 {strides = array<i32>} : memref<216x25xf32, #tpu.memory_space<vmem>>, vector<24x25xf32>,
    %cst_4 = arith.constant 1.57079637 : f32
    %6 = vector.broadcast %cst_4 : f32 to vector<24x25xf32>
    %7 = arith.addf %3, %6 : vector<24x25xf32>
    %8 = math.sin %7 : vector<24x25xf32>
    %c120 = arith.constant 120 : index
    %c0_5 = arith.constant 0 : index
    %9 = vector.load %arg2[%c120, %c0_5] : memref<216x25xf32, #tpu.memory_space<vmem>>, vector<24x25xf32>
    tpu.vector_store %arg2[%c120, %c0_5], %8 {strides = array<i32>} : memref<216x25xf32, #tpu.memory_space<vmem>>, vector<24x25xf32>,
    %cst_6 = arith.constant 2.000000e+00 : f32
    %10 = vector.broadcast %cst_6 : f32 to vector<24x25xf32>
    %11 = arith.mulf %0, %10 : vector<24x25xf32>
    %12 = math.sin %11 : vector<24x25xf32>
    %c48 = arith.constant 48 : index
    %c0_7 = arith.constant 0 : index
    %13 = vector.load %arg2[%c48, %c0_7] : memref<216x25xf32, #tpu.memory_space<vmem>>, vector<24x25xf32>
    tpu.vector_store %arg2[%c48, %c0_7], %12 {strides = array<i32>} : memref<216x25xf32, #tpu.memory_space<vmem>>, vector<24x25xf32>,
    %cst_8 = arith.constant 1.57079637 : f32
    %14 = vector.broadcast %cst_8 : f32 to vector<24x25xf32>
    %15 = arith.addf %11, %14 : vector<24x25xf32>
    %16 = math.sin %15 : vector<24x25xf32>
    %c144 = arith.constant 144 : index
    %c0_9 = arith.constant 0 : index
    %17 = vector.load %arg2[%c144, %c0_9] : memref<216x25xf32, #tpu.memory_space<vmem>>, vector<24x25xf32>
    tpu.vector_store %arg2[%c144, %c0_9], %16 {strides = array<i32>} : memref<216x25xf32, #tpu.memory_space<vmem>>, vector<24x25xf32>,
    %cst_10 = arith.constant 4.000000e+00 : f32
    %18 = vector.broadcast %cst_10 : f32 to vector<24x25xf32>
    %19 = arith.mulf %0, %18 : vector<24x25xf32>
    %20 = math.sin %19 : vector<24x25xf32>
    %c72 = arith.constant 72 : index
    %c0_11 = arith.constant 0 : index
    %21 = vector.load %arg2[%c72, %c0_11] : memref<216x25xf32, #tpu.memory_space<vmem>>, vector<24x25xf32>
    tpu.vector_store %arg2[%c72, %c0_11], %20 {strides = array<i32>} : memref<216x25xf32, #tpu.memory_space<vmem>>, vector<24x25xf32>,
    %cst_12 = arith.constant 1.57079637 : f32
    %22 = vector.broadcast %cst_12 : f32 to vector<24x25xf32>
    %23 = arith.addf %19, %22 : vector<24x25xf32>
    %24 = math.sin %23 : vector<24x25xf32>
    %c168 = arith.constant 168 : index
    %c0_13 = arith.constant 0 : index
    %25 = vector.load %arg2[%c168, %c0_13] : memref<216x25xf32, #tpu.memory_space<vmem>>, vector<24x25xf32>
    tpu.vector_store %arg2[%c168, %c0_13], %24 {strides = array<i32>} : memref<216x25xf32, #tpu.memory_space<vmem>>, vector<24x25xf32>,
    %cst_14 = arith.constant 8.000000e+00 : f32
    %26 = vector.broadcast %cst_14 : f32 to vector<24x25xf32>
    %27 = arith.mulf %0, %26 : vector<24x25xf32>
    %28 = math.sin %27 : vector<24x25xf32>
    %c96 = arith.constant 96 : index
    %c0_15 = arith.constant 0 : index
    %29 = vector.load %arg2[%c96, %c0_15] : memref<216x25xf32, #tpu.memory_space<vmem>>, vector<24x25xf32>
    tpu.vector_store %arg2[%c96, %c0_15], %28 {strides = array<i32>} : memref<216x25xf32, #tpu.memory_space<vmem>>, vector<24x25xf32>,
    %cst_16 = arith.constant 1.57079637 : f32
    %30 = vector.broadcast %cst_16 : f32 to vector<24x25xf32>
    %31 = arith.addf %27, %30 : vector<24x25xf32>
    %32 = math.sin %31 : vector<24x25xf32>
    %c192 = arith.constant 192 : index
    %c0_17 = arith.constant 0 : index
    %33 = vector.load %arg2[%c192, %c0_17] : memref<216x25xf32, #tpu.memory_space<vmem>>, vector<24x25xf32>
    tpu.vector_store %arg2[%c192, %c0_17], %32 {strides = array<i32>} : memref<216x25xf32, #tpu.memory_space<vmem>>, vector<24x25xf32>,
    return
  }
  func.func @transform_0(%arg0: i32) -> (i32, i32) {
    %c0_i32 = arith.constant 0 : i32
    %c0_i32_0 = arith.constant 0 : i32
    return %c0_i32, %arg0 : i32, i32
  }
  func.func @transform_1(%arg0: i32) -> (i32, i32) {
    %c0_i32 = arith.constant 0 : i32
    %c0_i32_0 = arith.constant 0 : i32
    return %c0_i32, %arg0 : i32, i32
  }
}

</mosaic_0001>

<llo_original>
// kernel: tpu_custom_call.1
$region0: #{tpu_custom_call.1}
  #allocation0 [shape = 'u32[]', space=smem, size = 0x4, offset = 0x4, fixed_abs, tag = 'smem constant byte address 0x4 - core index']
  #allocation1 [shape = 'u32[144,128]{1,0:T(1,128)}', space=vmem, size = 0x12000, scoped, tag = 'internal scratch']
  %s0 = inlined_call_operand.hbm [shape: f32[24,25], index: 0, kind: input, shape index: {}]
  %s1 = inlined_call_operand.vmem [shape: f32[216,25], index: 1, kind: output, shape index: {}]
  %s2 = sld [smem:[#allocation0]]
  $region18: #{tpu_custom_call.1} parent=0
    _
  %s4 = ssub.s32 1, %s2
  %s5 = scalar_select 0, %s4, %s2
  $region1: #{tpu_custom_call.1} parent=0
    #allocation2 [shape = 'u8[12288]{0}', space=vmem, size = 0x3000, scoped, tag = 'input window, operand 0, single buffered']
    #allocation3 [shape = 's32[1]{0}', space=sflag, size = 0x4, scoped, tag = 'scoped memory for tpu_custom_call.1']
    %6 = vsyncpa [#allocation3], 0
    // Predicated region
    $region2: #{tpu_custom_call.1} parent=1 // pred_check
      _
    $region3: #{tpu_custom_call.1} parent=1 // pred_check_branch
      %8 = sbr.rel (0) target = $region5
    $region4: #{tpu_custom_call.1} parent=1 // pred_region
      %s10 = ssub.s32 384, 384
      %11 = vsyncadd [#allocation3], %s10
      %s12 = sshll.u32 [#allocation2], 4
      %s13 = int_to_ptr.vmem [resolvable:$true] %s12
      %18 = dma.hbm_to_vmem [thread:$0]  %s0, 384, %s13, [#allocation3], 128, 128, 8
    $region5: #{tpu_custom_call.1} parent=1 // pred_fallthru
      _
    // Predicated region
    $region6: #{tpu_custom_call.1} parent=1 // pred_check
      _
    $region7: #{tpu_custom_call.1} parent=1 // pred_check_branch
      %20 = sbr.rel (0) target = $region9
    $region8: #{tpu_custom_call.1} parent=1 // pred_region
      %21 = dma.done [#allocation3], 384
    $region9: #{tpu_custom_call.1} parent=1 // pred_fallthru
      _
    %v22 = vld [vmem:[#allocation2] sm:$0xff]
    %v23 = vld [vmem:[#allocation2 + $0x8] sm:$0xff]
    %v24 = vld [vmem:[#allocation2 + $0x10] sm:$0xff]
    %vm25 = vcmask 203776
    %26 = vst.msk [vmem:[%s1] sm:$0xff] %vm25, %v22
    %27 = vst.msk [vmem:[%s1 + $0x8] sm:$0xff] %vm25, %v23
    %28 = vst.msk [vmem:[%s1 + $0x10] sm:$0xff] %vm25, %v24
    %v29 = vand.u32 2147483647, %v22
    %vm30 = vcmp.le.f32.partialorder %v29, 0.7853982
    %vm31 = vcmp.lt.s32.totalorder %v22, 0
    %v32 = vand.u32 %v22, 2139095040
    %v33 = vshrl.u32 %v32, 23
    %v34 = vsub.s32 %v33, 127
    %v35 = vand.u32 2147483647, %v22
    %v36 = vand.u32 %v35, 8388607
    %v37 = vor.u32 %v36, 8388608
    %v38 = vsub.s32 0, %v37
    %v39 = vadd.s32 %v34, 1
    %vm40 = vcmp.gt.s32.totalorder %v39, 0
    %v41 = vsel %vm40, %v39, 0
    %v42 = vshrl.u32 %v41, 5
    %v43 = vand.u32 %v41, 31
    %v44 = vsub.s32 32, %v43
    %v45 = vshrl.u32 683565275, %v44
    %v46 = vshll.u32 683565275, %v43
    %v47 = vshrl.u32 2475754826, %v44
    %v48 = vor.u32 %v46, %v47
    %v49 = vshll.u32 2475754826, %v43
    %v50 = vshrl.u32 2131351028, %v44
    %v51 = vor.u32 %v49, %v50
    %v52 = vshll.u32 2131351028, %v43
    %v53 = vshrl.u32 2102212464, %v44
    %v54 = vor.u32 %v52, %v53
    %v55 = vshll.u32 2102212464, %v43
    %v56 = vshrl.u32 920167782, %v44
    %v57 = vor.u32 %v55, %v56
    %v58 = vshll.u32 920167782, %v43
    %v59 = vshrl.u32 1326507024, %v44
    %v60 = vor.u32 %v58, %v59
    %vm61 = vcmp.lt.s32.totalorder %v42, 1
    %vm62 = vcmp.lt.s32.totalorder %v42, 2
    %vm63 = vcmp.lt.s32.totalorder %v42, 3
    %vm64 = vcmp.lt.s32.totalorder %v42, 4
    %v65 = vsel %vm61, %v45, %v48
    %v66 = vsel %vm64, %v54, 2102212464
    %v67 = vsel %vm63, %v51, %v66
    %v68 = vsel %vm62, %v65, %v67
    %v69 = vsel %vm61, %v48, %v51
    %v70 = vsel %vm64, %v57, 920167782
    %v71 = vsel %vm63, %v54, %v70
    %v72 = vsel %vm62, %v69, %v71
    %v73 = vsel %vm61, %v51, %v54
    %v74 = vsel %vm64, %v60, 1326507024
    %v75 = vsel %vm63, %v57, %v74
    %v76 = vsel %vm62, %v73, %v75
    %v77 = vshll.u32 %v37, 8
    %v78 = vmul.u32.u64.compose %v77, %v76
    %v79 = vextract.low.u32 %v78
    %v80 = vextract.high.u32 %v78
    %v81 = vmul.u32.u64.compose %v77, %v72
    %v82 = vextract.low.u32 %v81
    %v83 = vextract.high.u32 %v81
    %v84 = vmul.u32 %v77, %v68
    %v85 = vadd.s32 %v80, %v82
    %vm86 = vc.u32 %v80, %v82
    %v87 = vadd.s32 %v83, 1
    %v88 = vsel %vm86, %v87, %v83
    %v89 = vadd.s32 %v84, %v88
    %v90 = vadd.s32 %v89, 536870912
    %v91 = vshrl.u32 %v90, 30
    %v92 = vshll.u32 %v91, 30
    %v93 = vsub.s32 %v89, %v92
    %vm94 = vcmp.lt.s32.totalorder %v93, 0
    %v95 = vsub.s32 0, %v93
    %v96 = vsel %vm94, %v95, %v93
    %v97 = vclz %v96
    %v98 = vsub.s32 %v97, 2
    %vm99 = vcmp.gt.s32.totalorder 0, %v98
    %v100 = vsel %vm99, 0, %v98
    %v101 = vsub.s32 32, %v100
    %v102 = vshll.u32 %v93, %v100
    %v103 = vshrl.u32 %v85, %v101
    %v104 = vor.u32 %v102, %v103
    %v105 = vsub.s32 4294967266, %v100
    %v106 = vadd.s32 %v105, 127
    %v107 = vshll.u32 %v106, 23
    %v108 = vor.u32 4788187, %v107
    %v109 = vand.u32 2147483647, %v108
    %v111 = vcvt.s32.f32 %v104
    %v112 = vmul.f32 %v111, %v109
    %v113 = vxor.u32 %v112, 2147483648
    %v114 = vsel %vm31, %v113, %v112
    %v115 = vsub.s32 4, %v91
    %v116 = vsel %vm31, %v115, %v91
    %v117 = vsel %vm30, %v22, %v114
    %v118 = vsel %vm30, 0, %v116
    %v119 = vcosq.f32.pop %v117
    %v120 = vsinq.f32.pop %v117
    %vm121 = vweird.f32 %v22
    %v122 = vadd.s32 %v118, 3
    %v123 = vand.u32 %v122, 3
    %vm124 = vcmp.lt.s32.totalorder %v123, 2
    %vm125 = vcmp.eq.s32.totalorder %v123, 0
    %v126 = vxor.u32 %v120, 2147483648
    %v127 = vsel %vm125, %v119, %v126
    %vm128 = vcmp.eq.s32.totalorder %v123, 2
    %v129 = vxor.u32 %v119, 2147483648
    %v130 = vsel %vm128, %v129, %v120
    %v131 = vsel %vm124, %v127, %v130
    %v132 = vsel %vm121, nan, %v131
    %v133 = vand.u32 2147483647, %v23
    %vm134 = vcmp.le.f32.partialorder %v133, 0.7853982
    %vm135 = vcmp.lt.s32.totalorder %v23, 0
    %v136 = vand.u32 %v23, 2139095040
    %v137 = vshrl.u32 %v136, 23
    %v138 = vsub.s32 %v137, 127
    %v139 = vand.u32 2147483647, %v23
    %v140 = vand.u32 %v139, 8388607
    %v141 = vor.u32 %v140, 8388608
    %v142 = vsub.s32 0, %v141
    %v143 = vadd.s32 %v138, 1
    %vm144 = vcmp.gt.s32.totalorder %v143, 0
    %v145 = vsel %vm144, %v143, 0
    %v146 = vshrl.u32 %v145, 5
    %v147 = vand.u32 %v145, 31
    %v148 = vsub.s32 32, %v147
    %v149 = vshrl.u32 683565275, %v148
    %v150 = vshll.u32 683565275, %v147
    %v151 = vshrl.u32 2475754826, %v148
    %v152 = vor.u32 %v150, %v151
    %v153 = vshll.u32 2475754826, %v147
    %v154 = vshrl.u32 2131351028, %v148
    %v155 = vor.u32 %v153, %v154
    %v156 = vshll.u32 2131351028, %v147
    %v157 = vshrl.u32 2102212464, %v148
    %v158 = vor.u32 %v156, %v157
    %v159 = vshll.u32 2102212464, %v147
    %v160 = vshrl.u32 920167782, %v148
    %v161 = vor.u32 %v159, %v160
    %v162 = vshll.u32 920167782, %v147
    %v163 = vshrl.u32 1326507024, %v148
    %v164 = vor.u32 %v162, %v163
    %vm165 = vcmp.lt.s32.totalorder %v146, 1
    %vm166 = vcmp.lt.s32.totalorder %v146, 2
    %vm167 = vcmp.lt.s32.totalorder %v146, 3
    %vm168 = vcmp.lt.s32.totalorder %v146, 4
    %v169 = vsel %vm165, %v149, %v152
    %v170 = vsel %vm168, %v158, 2102212464
    %v171 = vsel %vm167, %v155, %v170
    %v172 = vsel %vm166, %v169, %v171
    %v173 = vsel %vm165, %v152, %v155
    %v174 = vsel %vm168, %v161, 920167782
    %v175 = vsel %vm167, %v158, %v174
    %v176 = vsel %vm166, %v173, %v175
    %v177 = vsel %vm165, %v155, %v158
    %v178 = vsel %vm168, %v164, 1326507024
    %v179 = vsel %vm167, %v161, %v178
    %v180 = vsel %vm166, %v177, %v179
    %v181 = vshll.u32 %v141, 8
    %v182 = vmul.u32.u64.compose %v181, %v180
    %v183 = vextract.low.u32 %v182
    %v184 = vextract.high.u32 %v182
    %v185 = vmul.u32.u64.compose %v181, %v176
    %v186 = vextract.low.u32 %v185
    %v187 = vextract.high.u32 %v185
    %v188 = vmul.u32 %v181, %v172
    %v189 = vadd.s32 %v184, %v186
    %vm190 = vc.u32 %v184, %v186
    %v191 = vadd.s32 %v187, 1
    %v192 = vsel %vm190, %v191, %v187
    %v193 = vadd.s32 %v188, %v192
    %v194 = vadd.s32 %v193, 536870912
    %v195 = vshrl.u32 %v194, 30
    %v196 = vshll.u32 %v195, 30
    %v197 = vsub.s32 %v193, %v196
    %vm198 = vcmp.lt.s32.totalorder %v197, 0
    %v199 = vsub.s32 0, %v197
    %v200 = vsel %vm198, %v199, %v197
    %v201 = vclz %v200
    %v202 = vsub.s32 %v201, 2
    %vm203 = vcmp.gt.s32.totalorder 0, %v202
    %v204 = vsel %vm203, 0, %v202
    %v205 = vsub.s32 32, %v204
    %v206 = vshll.u32 %v197, %v204
    %v207 = vshrl.u32 %v189, %v205
    %v208 = vor.u32 %v206, %v207
    %v209 = vsub.s32 4294967266, %v204
    %v210 = vadd.s32 %v209, 127
    %v211 = vshll.u32 %v210, 23
    %v212 = vor.u32 4788187, %v211
    %v213 = vand.u32 2147483647, %v212
    %v215 = vcvt.s32.f32 %v208
    %v216 = vmul.f32 %v215, %v213
    %v217 = vxor.u32 %v216, 2147483648
    %v218 = vsel %vm135, %v217, %v216
    %v219 = vsub.s32 4, %v195
    %v220 = vsel %vm135, %v219, %v195
    %v221 = vsel %vm134, %v23, %v218
    %v222 = vsel %vm134, 0, %v220
    %v223 = vcosq.f32.pop %v221
    %v224 = vsinq.f32.pop %v221
    %vm225 = vweird.f32 %v23
    %v226 = vadd.s32 %v222, 3
    %v227 = vand.u32 %v226, 3
    %vm228 = vcmp.lt.s32.totalorder %v227, 2
    %vm229 = vcmp.eq.s32.totalorder %v227, 0
    %v230 = vxor.u32 %v224, 2147483648
    %v231 = vsel %vm229, %v223, %v230
    %vm232 = vcmp.eq.s32.totalorder %v227, 2
    %v233 = vxor.u32 %v223, 2147483648
    %v234 = vsel %vm232, %v233, %v224
    %v235 = vsel %vm228, %v231, %v234
    %v236 = vsel %vm225, nan, %v235
    %v237 = vand.u32 2147483647, %v24
    %vm238 = vcmp.le.f32.partialorder %v237, 0.7853982
    %vm239 = vcmp.lt.s32.totalorder %v24, 0
    %v240 = vand.u32 %v24, 2139095040
    %v241 = vshrl.u32 %v240, 23
    %v242 = vsub.s32 %v241, 127
    %v243 = vand.u32 2147483647, %v24
    %v244 = vand.u32 %v243, 8388607
    %v245 = vor.u32 %v244, 8388608
    %v246 = vsub.s32 0, %v245
    %v247 = vadd.s32 %v242, 1
    %vm248 = vcmp.gt.s32.totalorder %v247, 0
    %v249 = vsel %vm248, %v247, 0
    %v250 = vshrl.u32 %v249, 5
    %v251 = vand.u32 %v249, 31
    %v252 = vsub.s32 32, %v251
    %v253 = vshrl.u32 683565275, %v252
    %v254 = vshll.u32 683565275, %v251
    %v255 = vshrl.u32 2475754826, %v252
    %v256 = vor.u32 %v254, %v255
    %v257 = vshll.u32 2475754826, %v251
    %v258 = vshrl.u32 2131351028, %v252
    %v259 = vor.u32 %v257, %v258
    %v260 = vshll.u32 2131351028, %v251
    %v261 = vshrl.u32 2102212464, %v252
    %v262 = vor.u32 %v260, %v261
    %v263 = vshll.u32 2102212464, %v251
    %v264 = vshrl.u32 920167782, %v252
    %v265 = vor.u32 %v263, %v264
    %v266 = vshll.u32 920167782, %v251
    %v267 = vshrl.u32 1326507024, %v252
    %v268 = vor.u32 %v266, %v267
    %vm269 = vcmp.lt.s32.totalorder %v250, 1
    %vm270 = vcmp.lt.s32.totalorder %v250, 2
    %vm271 = vcmp.lt.s32.totalorder %v250, 3
    %vm272 = vcmp.lt.s32.totalorder %v250, 4
    %v273 = vsel %vm269, %v253, %v256
    %v274 = vsel %vm272, %v262, 2102212464
    %v275 = vsel %vm271, %v259, %v274
    %v276 = vsel %vm270, %v273, %v275
    %v277 = vsel %vm269, %v256, %v259
    %v278 = vsel %vm272, %v265, 920167782
    %v279 = vsel %vm271, %v262, %v278
    %v280 = vsel %vm270, %v277, %v279
    %v281 = vsel %vm269, %v259, %v262
    %v282 = vsel %vm272, %v268, 1326507024
    %v283 = vsel %vm271, %v265, %v282
    %v284 = vsel %vm270, %v281, %v283
    %v285 = vshll.u32 %v245, 8
    %v286 = vmul.u32.u64.compose %v285, %v284
    %v287 = vextract.low.u32 %v286
    %v288 = vextract.high.u32 %v286
    %v289 = vmul.u32.u64.compose %v285, %v280
    %v290 = vextract.low.u32 %v289
    %v291 = vextract.high.u32 %v289
    %v292 = vmul.u32 %v285, %v276
    %v293 = vadd.s32 %v288, %v290
    %vm294 = vc.u32 %v288, %v290
    %v295 = vadd.s32 %v291, 1
    %v296 = vsel %vm294, %v295, %v291
    %v297 = vadd.s32 %v292, %v296
    %v298 = vadd.s32 %v297, 536870912
    %v299 = vshrl.u32 %v298, 30
    %v300 = vshll.u32 %v299, 30
    %v301 = vsub.s32 %v297, %v300
    %vm302 = vcmp.lt.s32.totalorder %v301, 0
    %v303 = vsub.s32 0, %v301
    %v304 = vsel %vm302, %v303, %v301
    %v305 = vclz %v304
    %v306 = vsub.s32 %v305, 2
    %vm307 = vcmp.gt.s32.totalorder 0, %v306
    %v308 = vsel %vm307, 0, %v306
    %v309 = vsub.s32 32, %v308
    %v310 = vshll.u32 %v301, %v308
    %v311 = vshrl.u32 %v293, %v309
    %v312 = vor.u32 %v310, %v311
    %v313 = vsub.s32 4294967266, %v308
    %v314 = vadd.s32 %v313, 127
    %v315 = vshll.u32 %v314, 23
    %v316 = vor.u32 4788187, %v315
    %v317 = vand.u32 2147483647, %v316
    %v319 = vcvt.s32.f32 %v312
    %v320 = vmul.f32 %v319, %v317
    %v321 = vxor.u32 %v320, 2147483648
    %v322 = vsel %vm239, %v321, %v320
    %v323 = vsub.s32 4, %v299
    %v324 = vsel %vm239, %v323, %v299
    %v325 = vsel %vm238, %v24, %v322
    %v326 = vsel %vm238, 0, %v324
    %v327 = vcosq.f32.pop %v325
    %v328 = vsinq.f32.pop %v325
    %vm329 = vweird.f32 %v24
    %v330 = vadd.s32 %v326, 3
    %v331 = vand.u32 %v330, 3
    %vm332 = vcmp.lt.s32.totalorder %v331, 2
    %vm333 = vcmp.eq.s32.totalorder %v331, 0
    %v334 = vxor.u32 %v328, 2147483648
    %v335 = vsel %vm333, %v327, %v334
    %vm336 = vcmp.eq.s32.totalorder %v331, 2
    %v337 = vxor.u32 %v327, 2147483648
    %v338 = vsel %vm336, %v337, %v328
    %v339 = vsel %vm332, %v335, %v338
    %v340 = vsel %vm329, nan, %v339
    %341 = vst.msk [vmem:[%s1 + $0x18] sm:$0xff] %vm25, %v132
    %342 = vst.msk [vmem:[%s1 + $0x20] sm:$0xff] %vm25, %v236
    %343 = vst.msk [vmem:[%s1 + $0x28] sm:$0xff] %vm25, %v340
    %v344 = vadd.f32 %v22, 1.5707964
    %v345 = vadd.f32 %v23, 1.5707964
    %v346 = vadd.f32 %v24, 1.5707964
    %v347 = vand.u32 2147483647, %v344
    %vm348 = vcmp.le.f32.partialorder %v347, 0.7853982
    %vm349 = vcmp.lt.s32.totalorder %v344, 0
    %v350 = vand.u32 %v344, 2139095040
    %v351 = vshrl.u32 %v350, 23
    %v352 = vsub.s32 %v351, 127
    %v353 = vand.u32 2147483647, %v344
    %v354 = vand.u32 %v353, 8388607
    %v355 = vor.u32 %v354, 8388608
    %v356 = vsub.s32 0, %v355
    %v357 = vadd.s32 %v352, 1
    %vm358 = vcmp.gt.s32.totalorder %v357, 0
    %v359 = vsel %vm358, %v357, 0
    %v360 = vshrl.u32 %v359, 5
    %v361 = vand.u32 %v359, 31
    %v362 = vsub.s32 32, %v361
    %v363 = vshrl.u32 683565275, %v362
    %v364 = vshll.u32 683565275, %v361
    %v365 = vshrl.u32 2475754826, %v362
    %v366 = vor.u32 %v364, %v365
    %v367 = vshll.u32 2475754826, %v361
    %v368 = vshrl.u32 2131351028, %v362
    %v369 = vor.u32 %v367, %v368
    %v370 = vshll.u32 2131351028, %v361
    %v371 = vshrl.u32 2102212464, %v362
    %v372 = vor.u32 %v370, %v371
    %v373 = vshll.u32 2102212464, %v361
    %v374 = vshrl.u32 920167782, %v362
    %v375 = vor.u32 %v373, %v374
    %v376 = vshll.u32 920167782, %v361
    %v377 = vshrl.u32 1326507024, %v362
    %v378 = vor.u32 %v376, %v377
    %vm379 = vcmp.lt.s32.totalorder %v360, 1
    %vm380 = vcmp.lt.s32.totalorder %v360, 2
    %vm381 = vcmp.lt.s32.totalorder %v360, 3
    %vm382 = vcmp.lt.s32.totalorder %v360, 4
    %v383 = vsel %vm379, %v363, %v366
    %v384 = vsel %vm382, %v372, 2102212464
    %v385 = vsel %vm381, %v369, %v384
    %v386 = vsel %vm380, %v383, %v385
    %v387 = vsel %vm379, %v366, %v369
    %v388 = vsel %vm382, %v375, 920167782
    %v389 = vsel %vm381, %v372, %v388
    %v390 = vsel %vm380, %v387, %v389
    %v391 = vsel %vm379, %v369, %v372
    %v392 = vsel %vm382, %v378, 1326507024
    %v393 = vsel %vm381, %v375, %v392
    %v394 = vsel %vm380, %v391, %v393
    %v395 = vshll.u32 %v355, 8
    %v396 = vmul.u32.u64.compose %v395, %v394
    %v397 = vextract.low.u32 %v396
    %v398 = vextract.high.u32 %v396
    %v399 = vmul.u32.u64.compose %v395, %v390
    %v400 = vextract.low.u32 %v399
    %v401 = vextract.high.u32 %v399
    %v402 = vmul.u32 %v395, %v386
    %v403 = vadd.s32 %v398, %v400
    %vm404 = vc.u32 %v398, %v400
    %v405 = vadd.s32 %v401, 1
    %v406 = vsel %vm404, %v405, %v401
    %v407 = vadd.s32 %v402, %v406
    %v408 = vadd.s32 %v407, 536870912
    %v409 = vshrl.u32 %v408, 30
    %v410 = vshll.u32 %v409, 30
    %v411 = vsub.s32 %v407, %v410
    %vm412 = vcmp.lt.s32.totalorder %v411, 0
    %v413 = vsub.s32 0, %v411
    %v414 = vsel %vm412, %v413, %v411
    %v415 = vclz %v414
    %v416 = vsub.s32 %v415, 2
    %vm417 = vcmp.gt.s32.totalorder 0, %v416
    %v418 = vsel %vm417, 0, %v416
    %v419 = vsub.s32 32, %v418
    %v420 = vshll.u32 %v411, %v418
    %v421 = vshrl.u32 %v403, %v419
    %v422 = vor.u32 %v420, %v421
    %v423 = vsub.s32 4294967266, %v418
    %v424 = vadd.s32 %v423, 127
    %v425 = vshll.u32 %v424, 23
    %v426 = vor.u32 4788187, %v425
    %v427 = vand.u32 2147483647, %v426
    %v429 = vcvt.s32.f32 %v422
    %v430 = vmul.f32 %v429, %v427
    %v431 = vxor.u32 %v430, 2147483648
    %v432 = vsel %vm349, %v431, %v430
    %v433 = vsub.s32 4, %v409
    %v434 = vsel %vm349, %v433, %v409
    %v435 = vsel %vm348, %v344, %v432
    %v436 = vsel %vm348, 0, %v434
    %v437 = vcosq.f32.pop %v435
    %v438 = vsinq.f32.pop %v435
    %vm439 = vweird.f32 %v344
    %v440 = vadd.s32 %v436, 3
    %v441 = vand.u32 %v440, 3
    %vm442 = vcmp.lt.s32.totalorder %v441, 2
    %vm443 = vcmp.eq.s32.totalorder %v441, 0
    %v444 = vxor.u32 %v438, 2147483648
    %v445 = vsel %vm443, %v437, %v444
    %vm446 = vcmp.eq.s32.totalorder %v441, 2
    %v447 = vxor.u32 %v437, 2147483648
    %v448 = vsel %vm446, %v447, %v438
    %v449 = vsel %vm442, %v445, %v448
    %v450 = vsel %vm439, nan, %v449
    %v451 = vand.u32 2147483647, %v345
    %vm452 = vcmp.le.f32.partialorder %v451, 0.7853982
    %vm453 = vcmp.lt.s32.totalorder %v345, 0
    %v454 = vand.u32 %v345, 2139095040
    %v455 = vshrl.u32 %v454, 23
    %v456 = vsub.s32 %v455, 127
    %v457 = vand.u32 2147483647, %v345
    %v458 = vand.u32 %v457, 8388607
    %v459 = vor.u32 %v458, 8388608
    %v460 = vsub.s32 0, %v459
    %v461 = vadd.s32 %v456, 1
    %vm462 = vcmp.gt.s32.totalorder %v461, 0
    %v463 = vsel %vm462, %v461, 0
    %v464 = vshrl.u32 %v463, 5
    %v465 = vand.u32 %v463, 31
    %v466 = vsub.s32 32, %v465
    %v467 = vshrl.u32 683565275, %v466
    %v468 = vshll.u32 683565275, %v465
    %v469 = vshrl.u32 2475754826, %v466
    %v470 = vor.u32 %v468, %v469
    %v471 = vshll.u32 2475754826, %v465
    %v472 = vshrl.u32 2131351028, %v466
    %v473 = vor.u32 %v471, %v472
    %v474 = vshll.u32 2131351028, %v465
    %v475 = vshrl.u32 2102212464, %v466
    %v476 = vor.u32 %v474, %v475
    %v477 = vshll.u32 2102212464, %v465
    %v478 = vshrl.u32 920167782, %v466
    %v479 = vor.u32 %v477, %v478
    %v480 = vshll.u32 920167782, %v465
    %v481 = vshrl.u32 1326507024, %v466
    %v482 = vor.u32 %v480, %v481
    %vm483 = vcmp.lt.s32.totalorder %v464, 1
    %vm484 = vcmp.lt.s32.totalorder %v464, 2
    %vm485 = vcmp.lt.s32.totalorder %v464, 3
    %vm486 = vcmp.lt.s32.totalorder %v464, 4
    %v487 = vsel %vm483, %v467, %v470
    %v488 = vsel %vm486, %v476, 2102212464
    %v489 = vsel %vm485, %v473, %v488
    %v490 = vsel %vm484, %v487, %v489
    %v491 = vsel %vm483, %v470, %v473
    %v492 = vsel %vm486, %v479, 920167782
    %v493 = vsel %vm485, %v476, %v492
    %v494 = vsel %vm484, %v491, %v493
    %v495 = vsel %vm483, %v473, %v476
    %v496 = vsel %vm486, %v482, 1326507024
    %v497 = vsel %vm485, %v479, %v496
    %v498 = vsel %vm484, %v495, %v497
    %v499 = vshll.u32 %v459, 8
    %v500 = vmul.u32.u64.compose %v499, %v498
    %v501 = vextract.low.u32 %v500
    %v502 = vextract.high.u32 %v500
    %v503 = vmul.u32.u64.compose %v499, %v494
    %v504 = vextract.low.u32 %v503
    %v505 = vextract.high.u32 %v503
    %v506 = vmul.u32 %v499, %v490
    %v507 = vadd.s32 %v502, %v504
    %vm508 = vc.u32 %v502, %v504
    %v509 = vadd.s32 %v505, 1
    %v510 = vsel %vm508, %v509, %v505
    %v511 = vadd.s32 %v506, %v510
    %v512 = vadd.s32 %v511, 536870912
    %v513 = vshrl.u32 %v512, 30
    %v514 = vshll.u32 %v513, 30
    %v515 = vsub.s32 %v511, %v514
    %vm516 = vcmp.lt.s32.totalorder %v515, 0
    %v517 = vsub.s32 0, %v515
    %v518 = vsel %vm516, %v517, %v515
    %v519 = vclz %v518
    %v520 = vsub.s32 %v519, 2
    %vm521 = vcmp.gt.s32.totalorder 0, %v520
    %v522 = vsel %vm521, 0, %v520
    %v523 = vsub.s32 32, %v522
    %v524 = vshll.u32 %v515, %v522
    %v525 = vshrl.u32 %v507, %v523
    %v526 = vor.u32 %v524, %v525
    %v527 = vsub.s32 4294967266, %v522
    %v528 = vadd.s32 %v527, 127
    %v529 = vshll.u32 %v528, 23
    %v530 = vor.u32 4788187, %v529
    %v531 = vand.u32 2147483647, %v530
    %v533 = vcvt.s32.f32 %v526
    %v534 = vmul.f32 %v533, %v531
    %v535 = vxor.u32 %v534, 2147483648
    %v536 = vsel %vm453, %v535, %v534
    %v537 = vsub.s32 4, %v513
    %v538 = vsel %vm453, %v537, %v513
    %v539 = vsel %vm452, %v345, %v536
    %v540 = vsel %vm452, 0, %v538
    %v541 = vcosq.f32.pop %v539
    %v542 = vsinq.f32.pop %v539
    %vm543 = vweird.f32 %v345
    %v544 = vadd.s32 %v540, 3
    %v545 = vand.u32 %v544, 3
    %vm546 = vcmp.lt.s32.totalorder %v545, 2
    %vm547 = vcmp.eq.s32.totalorder %v545, 0
    %v548 = vxor.u32 %v542, 2147483648
    %v549 = vsel %vm547, %v541, %v548
    %vm550 = vcmp.eq.s32.totalorder %v545, 2
    %v551 = vxor.u32 %v541, 2147483648
    %v552 = vsel %vm550, %v551, %v542
    %v553 = vsel %vm546, %v549, %v552
    %v554 = vsel %vm543, nan, %v553
    %v555 = vand.u32 2147483647, %v346
    %vm556 = vcmp.le.f32.partialorder %v555, 0.7853982
    %vm557 = vcmp.lt.s32.totalorder %v346, 0
    %v558 = vand.u32 %v346, 2139095040
    %v559 = vshrl.u32 %v558, 23
    %v560 = vsub.s32 %v559, 127
    %v561 = vand.u32 2147483647, %v346
    %v562 = vand.u32 %v561, 8388607
    %v563 = vor.u32 %v562, 8388608
    %v564 = vsub.s32 0, %v563
    %v565 = vadd.s32 %v560, 1
    %vm566 = vcmp.gt.s32.totalorder %v565, 0
    %v567 = vsel %vm566, %v565, 0
    %v568 = vshrl.u32 %v567, 5
    %v569 = vand.u32 %v567, 31
    %v570 = vsub.s32 32, %v569
    %v571 = vshrl.u32 683565275, %v570
    %v572 = vshll.u32 683565275, %v569
    %v573 = vshrl.u32 2475754826, %v570
    %v574 = vor.u32 %v572, %v573
    %v575 = vshll.u32 2475754826, %v569
    %v576 = vshrl.u32 2131351028, %v570
    %v577 = vor.u32 %v575, %v576
    %v578 = vshll.u32 2131351028, %v569
    %v579 = vshrl.u32 2102212464, %v570
    %v580 = vor.u32 %v578, %v579
    %v581 = vshll.u32 2102212464, %v569
    %v582 = vshrl.u32 920167782, %v570
    %v583 = vor.u32 %v581, %v582
    %v584 = vshll.u32 920167782, %v569
    %v585 = vshrl.u32 1326507024, %v570
    %v586 = vor.u32 %v584, %v585
    %vm587 = vcmp.lt.s32.totalorder %v568, 1
    %vm588 = vcmp.lt.s32.totalorder %v568, 2
    %vm589 = vcmp.lt.s32.totalorder %v568, 3
    %vm590 = vcmp.lt.s32.totalorder %v568, 4
    %v591 = vsel %vm587, %v571, %v574
    %v592 = vsel %vm590, %v580, 2102212464
    %v593 = vsel %vm589, %v577, %v592
    %v594 = vsel %vm588, %v591, %v593
    %v595 = vsel %vm587, %v574, %v577
    %v596 = vsel %vm590, %v583, 920167782
    %v597 = vsel %vm589, %v580, %v596
    %v598 = vsel %vm588, %v595, %v597
    %v599 = vsel %vm587, %v577, %v580
    %v600 = vsel %vm590, %v586, 1326507024
    %v601 = vsel %vm589, %v583, %v600
    %v602 = vsel %vm588, %v599, %v601
    %v603 = vshll.u32 %v563, 8
    %v604 = vmul.u32.u64.compose %v603, %v602
    %v605 = vextract.low.u32 %v604
    %v606 = vextract.high.u32 %v604
    %v607 = vmul.u32.u64.compose %v603, %v598
    %v608 = vextract.low.u32 %v607
    %v609 = vextract.high.u32 %v607
    %v610 = vmul.u32 %v603, %v594
    %v611 = vadd.s32 %v606, %v608
    %vm612 = vc.u32 %v606, %v608
    %v613 = vadd.s32 %v609, 1
    %v614 = vsel %vm612, %v613, %v609
    %v615 = vadd.s32 %v610, %v614
    %v616 = vadd.s32 %v615, 536870912
    %v617 = vshrl.u32 %v616, 30
    %v618 = vshll.u32 %v617, 30
    %v619 = vsub.s32 %v615, %v618
    %vm620 = vcmp.lt.s32.totalorder %v619, 0
    %v621 = vsub.s32 0, %v619
    %v622 = vsel %vm620, %v621, %v619
    %v623 = vclz %v622
    %v624 = vsub.s32 %v623, 2
    %vm625 = vcmp.gt.s32.totalorder 0, %v624
    %v626 = vsel %vm625, 0, %v624
    %v627 = vsub.s32 32, %v626
    %v628 = vshll.u32 %v619, %v626
    %v629 = vshrl.u32 %v611, %v627
    %v630 = vor.u32 %v628, %v629
    %v631 = vsub.s32 4294967266, %v626
    %v632 = vadd.s32 %v631, 127
    %v633 = vshll.u32 %v632, 23
    %v634 = vor.u32 4788187, %v633
    %v635 = vand.u32 2147483647, %v634
    %v637 = vcvt.s32.f32 %v630
    %v638 = vmul.f32 %v637, %v635
    %v639 = vxor.u32 %v638, 2147483648
    %v640 = vsel %vm557, %v639, %v638
    %v641 = vsub.s32 4, %v617
    %v642 = vsel %vm557, %v641, %v617
    %v643 = vsel %vm556, %v346, %v640
    %v644 = vsel %vm556, 0, %v642
    %v645 = vcosq.f32.pop %v643
    %v646 = vsinq.f32.pop %v643
    %vm647 = vweird.f32 %v346
    %v648 = vadd.s32 %v644, 3
    %v649 = vand.u32 %v648, 3
    %vm650 = vcmp.lt.s32.totalorder %v649, 2
    %vm651 = vcmp.eq.s32.totalorder %v649, 0
    %v652 = vxor.u32 %v646, 2147483648
    %v653 = vsel %vm651, %v645, %v652
    %vm654 = vcmp.eq.s32.totalorder %v649, 2
    %v655 = vxor.u32 %v645, 2147483648
    %v656 = vsel %vm654, %v655, %v646
    %v657 = vsel %vm650, %v653, %v656
    %v658 = vsel %vm647, nan, %v657
    %659 = vst.msk [vmem:[%s1 + $0x78] sm:$0xff] %vm25, %v450
    %660 = vst.msk [vmem:[%s1 + $0x80] sm:$0xff] %vm25, %v554
    %661 = vst.msk [vmem:[%s1 + $0x88] sm:$0xff] %vm25, %v658
    %v662 = vmul.f32 %v22, 2.0
    %v663 = vmul.f32 %v23, 2.0
    %v664 = vmul.f32 %v24, 2.0
    %v665 = vand.u32 2147483647, %v662
    %vm666 = vcmp.le.f32.partialorder %v665, 0.7853982
    %vm667 = vcmp.lt.s32.totalorder %v662, 0
    %v668 = vand.u32 %v662, 2139095040
    %v669 = vshrl.u32 %v668, 23
    %v670 = vsub.s32 %v669, 127
    %v671 = vand.u32 2147483647, %v662
    %v672 = vand.u32 %v671, 8388607
    %v673 = vor.u32 %v672, 8388608
    %v674 = vsub.s32 0, %v673
    %v675 = vadd.s32 %v670, 1
    %vm676 = vcmp.gt.s32.totalorder %v675, 0
    %v677 = vsel %vm676, %v675, 0
    %v678 = vshrl.u32 %v677, 5
    %v679 = vand.u32 %v677, 31
    %v680 = vsub.s32 32, %v679
    %v681 = vshrl.u32 683565275, %v680
    %v682 = vshll.u32 683565275, %v679
    %v683 = vshrl.u32 2475754826, %v680
    %v684 = vor.u32 %v682, %v683
    %v685 = vshll.u32 2475754826, %v679
    %v686 = vshrl.u32 2131351028, %v680
    %v687 = vor.u32 %v685, %v686
    %v688 = vshll.u32 2131351028, %v679
    %v689 = vshrl.u32 2102212464, %v680
    %v690 = vor.u32 %v688, %v689
    %v691 = vshll.u32 2102212464, %v679
    %v692 = vshrl.u32 920167782, %v680
    %v693 = vor.u32 %v691, %v692
    %v694 = vshll.u32 920167782, %v679
    %v695 = vshrl.u32 1326507024, %v680
    %v696 = vor.u32 %v694, %v695
    %vm697 = vcmp.lt.s32.totalorder %v678, 1
    %vm698 = vcmp.lt.s32.totalorder %v678, 2
    %vm699 = vcmp.lt.s32.totalorder %v678, 3
    %vm700 = vcmp.lt.s32.totalorder %v678, 4
    %v701 = vsel %vm697, %v681, %v684
    %v702 = vsel %vm700, %v690, 2102212464
    %v703 = vsel %vm699, %v687, %v702
    %v704 = vsel %vm698, %v701, %v703
    %v705 = vsel %vm697, %v684, %v687
    %v706 = vsel %vm700, %v693, 920167782
    %v707 = vsel %vm699, %v690, %v706
    %v708 = vsel %vm698, %v705, %v707
    %v709 = vsel %vm697, %v687, %v690
    %v710 = vsel %vm700, %v696, 1326507024
    %v711 = vsel %vm699, %v693, %v710
    %v712 = vsel %vm698, %v709, %v711
    %v713 = vshll.u32 %v673, 8
    %v714 = vmul.u32.u64.compose %v713, %v712
    %v715 = vextract.low.u32 %v714
    %v716 = vextract.high.u32 %v714
    %v717 = vmul.u32.u64.compose %v713, %v708
    %v718 = vextract.low.u32 %v717
    %v719 = vextract.high.u32 %v717
    %v720 = vmul.u32 %v713, %v704
    %v721 = vadd.s32 %v716, %v718
    %vm722 = vc.u32 %v716, %v718
    %v723 = vadd.s32 %v719, 1
    %v724 = vsel %vm722, %v723, %v719
    %v725 = vadd.s32 %v720, %v724
    %v726 = vadd.s32 %v725, 536870912
    %v727 = vshrl.u32 %v726, 30
    %v728 = vshll.u32 %v727, 30
    %v729 = vsub.s32 %v725, %v728
    %vm730 = vcmp.lt.s32.totalorder %v729, 0
    %v731 = vsub.s32 0, %v729
    %v732 = vsel %vm730, %v731, %v729
    %v733 = vclz %v732
    %v734 = vsub.s32 %v733, 2
    %vm735 = vcmp.gt.s32.totalorder 0, %v734
    %v736 = vsel %vm735, 0, %v734
    %v737 = vsub.s32 32, %v736
    %v738 = vshll.u32 %v729, %v736
    %v739 = vshrl.u32 %v721, %v737
    %v740 = vor.u32 %v738, %v739
    %v741 = vsub.s32 4294967266, %v736
    %v742 = vadd.s32 %v741, 127
    %v743 = vshll.u32 %v742, 23
    %v744 = vor.u32 4788187, %v743
    %v745 = vand.u32 2147483647, %v744
    %v747 = vcvt.s32.f32 %v740
    %v748 = vmul.f32 %v747, %v745
    %v749 = vxor.u32 %v748, 2147483648
    %v750 = vsel %vm667, %v749, %v748
    %v751 = vsub.s32 4, %v727
    %v752 = vsel %vm667, %v751, %v727
    %v753 = vsel %vm666, %v662, %v750
    %v754 = vsel %vm666, 0, %v752
    %v755 = vcosq.f32.pop %v753
    %v756 = vsinq.f32.pop %v753
    %vm757 = vweird.f32 %v662
    %v758 = vadd.s32 %v754, 3
    %v759 = vand.u32 %v758, 3
    %vm760 = vcmp.lt.s32.totalorder %v759, 2
    %vm761 = vcmp.eq.s32.totalorder %v759, 0
    %v762 = vxor.u32 %v756, 2147483648
    %v763 = vsel %vm761, %v755, %v762
    %vm764 = vcmp.eq.s32.totalorder %v759, 2
    %v765 = vxor.u32 %v755, 2147483648
    %v766 = vsel %vm764, %v765, %v756
    %v767 = vsel %vm760, %v763, %v766
    %v768 = vsel %vm757, nan, %v767
    %v769 = vand.u32 2147483647, %v663
    %vm770 = vcmp.le.f32.partialorder %v769, 0.7853982
    %vm771 = vcmp.lt.s32.totalorder %v663, 0
    %v772 = vand.u32 %v663, 2139095040
    %v773 = vshrl.u32 %v772, 23
    %v774 = vsub.s32 %v773, 127
    %v775 = vand.u32 2147483647, %v663
    %v776 = vand.u32 %v775, 8388607
    %v777 = vor.u32 %v776, 8388608
    %v778 = vsub.s32 0, %v777
    %v779 = vadd.s32 %v774, 1
    %vm780 = vcmp.gt.s32.totalorder %v779, 0
    %v781 = vsel %vm780, %v779, 0
    %v782 = vshrl.u32 %v781, 5
    %v783 = vand.u32 %v781, 31
    %v784 = vsub.s32 32, %v783
    %v785 = vshrl.u32 683565275, %v784
    %v786 = vshll.u32 683565275, %v783
    %v787 = vshrl.u32 2475754826, %v784
    %v788 = vor.u32 %v786, %v787
    %v789 = vshll.u32 2475754826, %v783
    %v790 = vshrl.u32 2131351028, %v784
    %v791 = vor.u32 %v789, %v790
    %v792 = vshll.u32 2131351028, %v783
    %v793 = vshrl.u32 2102212464, %v784
    %v794 = vor.u32 %v792, %v793
    %v795 = vshll.u32 2102212464, %v783
    %v796 = vshrl.u32 920167782, %v784
    %v797 = vor.u32 %v795, %v796
    %v798 = vshll.u32 920167782, %v783
    %v799 = vshrl.u32 1326507024, %v784
    %v800 = vor.u32 %v798, %v799
    %vm801 = vcmp.lt.s32.totalorder %v782, 1
    %vm802 = vcmp.lt.s32.totalorder %v782, 2
    %vm803 = vcmp.lt.s32.totalorder %v782, 3
    %vm804 = vcmp.lt.s32.totalorder %v782, 4
    %v805 = vsel %vm801, %v785, %v788
    %v806 = vsel %vm804, %v794, 2102212464
    %v807 = vsel %vm803, %v791, %v806
    %v808 = vsel %vm802, %v805, %v807
    %v809 = vsel %vm801, %v788, %v791
    %v810 = vsel %vm804, %v797, 920167782
    %v811 = vsel %vm803, %v794, %v810
    %v812 = vsel %vm802, %v809, %v811
    %v813 = vsel %vm801, %v791, %v794
    %v814 = vsel %vm804, %v800, 1326507024
    %v815 = vsel %vm803, %v797, %v814
    %v816 = vsel %vm802, %v813, %v815
    %v817 = vshll.u32 %v777, 8
    %v818 = vmul.u32.u64.compose %v817, %v816
    %v819 = vextract.low.u32 %v818
    %v820 = vextract.high.u32 %v818
    %v821 = vmul.u32.u64.compose %v817, %v812
    %v822 = vextract.low.u32 %v821
    %v823 = vextract.high.u32 %v821
    %v824 = vmul.u32 %v817, %v808
    %v825 = vadd.s32 %v820, %v822
    %vm826 = vc.u32 %v820, %v822
    %v827 = vadd.s32 %v823, 1
    %v828 = vsel %vm826, %v827, %v823
    %v829 = vadd.s32 %v824, %v828
    %v830 = vadd.s32 %v829, 536870912
    %v831 = vshrl.u32 %v830, 30
    %v832 = vshll.u32 %v831, 30
    %v833 = vsub.s32 %v829, %v832
    %vm834 = vcmp.lt.s32.totalorder %v833, 0
    %v835 = vsub.s32 0, %v833
    %v836 = vsel %vm834, %v835, %v833
    %v837 = vclz %v836
    %v838 = vsub.s32 %v837, 2
    %vm839 = vcmp.gt.s32.totalorder 0, %v838
    %v840 = vsel %vm839, 0, %v838
    %v841 = vsub.s32 32, %v840
    %v842 = vshll.u32 %v833, %v840
    %v843 = vshrl.u32 %v825, %v841
    %v844 = vor.u32 %v842, %v843
    %v845 = vsub.s32 4294967266, %v840
    %v846 = vadd.s32 %v845, 127
    %v847 = vshll.u32 %v846, 23
    %v848 = vor.u32 4788187, %v847
    %v849 = vand.u32 2147483647, %v848
    %v851 = vcvt.s32.f32 %v844
    %v852 = vmul.f32 %v851, %v849
    %v853 = vxor.u32 %v852, 2147483648
    %v854 = vsel %vm771, %v853, %v852
    %v855 = vsub.s32 4, %v831
    %v856 = vsel %vm771, %v855, %v831
    %v857 = vsel %vm770, %v663, %v854
    %v858 = vsel %vm770, 0, %v856
    %v859 = vcosq.f32.pop %v857
    %v860 = vsinq.f32.pop %v857
    %vm861 = vweird.f32 %v663
    %v862 = vadd.s32 %v858, 3
    %v863 = vand.u32 %v862, 3
    %vm864 = vcmp.lt.s32.totalorder %v863, 2
    %vm865 = vcmp.eq.s32.totalorder %v863, 0
    %v866 = vxor.u32 %v860, 2147483648
    %v867 = vsel %vm865, %v859, %v866
    %vm868 = vcmp.eq.s32.totalorder %v863, 2
    %v869 = vxor.u32 %v859, 2147483648
    %v870 = vsel %vm868, %v869, %v860
    %v871 = vsel %vm864, %v867, %v870
    %v872 = vsel %vm861, nan, %v871
    %v873 = vand.u32 2147483647, %v664
    %vm874 = vcmp.le.f32.partialorder %v873, 0.7853982
    %vm875 = vcmp.lt.s32.totalorder %v664, 0
    %v876 = vand.u32 %v664, 2139095040
    %v877 = vshrl.u32 %v876, 23
    %v878 = vsub.s32 %v877, 127
    %v879 = vand.u32 2147483647, %v664
    %v880 = vand.u32 %v879, 8388607
    %v881 = vor.u32 %v880, 8388608
    %v882 = vsub.s32 0, %v881
    %v883 = vadd.s32 %v878, 1
    %vm884 = vcmp.gt.s32.totalorder %v883, 0
    %v885 = vsel %vm884, %v883, 0
    %v886 = vshrl.u32 %v885, 5
    %v887 = vand.u32 %v885, 31
    %v888 = vsub.s32 32, %v887
    %v889 = vshrl.u32 683565275, %v888
    %v890 = vshll.u32 683565275, %v887
    %v891 = vshrl.u32 2475754826, %v888
    %v892 = vor.u32 %v890, %v891
    %v893 = vshll.u32 2475754826, %v887
    %v894 = vshrl.u32 2131351028, %v888
    %v895 = vor.u32 %v893, %v894
    %v896 = vshll.u32 2131351028, %v887
    %v897 = vshrl.u32 2102212464, %v888
    %v898 = vor.u32 %v896, %v897
    %v899 = vshll.u32 2102212464, %v887
    %v900 = vshrl.u32 920167782, %v888
    %v901 = vor.u32 %v899, %v900
    %v902 = vshll.u32 920167782, %v887
    %v903 = vshrl.u32 1326507024, %v888
    %v904 = vor.u32 %v902, %v903
    %vm905 = vcmp.lt.s32.totalorder %v886, 1
    %vm906 = vcmp.lt.s32.totalorder %v886, 2
    %vm907 = vcmp.lt.s32.totalorder %v886, 3
    %vm908 = vcmp.lt.s32.totalorder %v886, 4
    %v909 = vsel %vm905, %v889, %v892
    %v910 = vsel %vm908, %v898, 2102212464
    %v911 = vsel %vm907, %v895, %v910
    %v912 = vsel %vm906, %v909, %v911
    %v913 = vsel %vm905, %v892, %v895
    %v914 = vsel %vm908, %v901, 920167782
    %v915 = vsel %vm907, %v898, %v914
    %v916 = vsel %vm906, %v913, %v915
    %v917 = vsel %vm905, %v895, %v898
    %v918 = vsel %vm908, %v904, 1326507024
    %v919 = vsel %vm907, %v901, %v918
    %v920 = vsel %vm906, %v917, %v919
    %v921 = vshll.u32 %v881, 8
    %v922 = vmul.u32.u64.compose %v921, %v920
    %v923 = vextract.low.u32 %v922
    %v924 = vextract.high.u32 %v922
    %v925 = vmul.u32.u64.compose %v921, %v916
    %v926 = vextract.low.u32 %v925
    %v927 = vextract.high.u32 %v925
    %v928 = vmul.u32 %v921, %v912
    %v929 = vadd.s32 %v924, %v926
    %vm930 = vc.u32 %v924, %v926
    %v931 = vadd.s32 %v927, 1
    %v932 = vsel %vm930, %v931, %v927
    %v933 = vadd.s32 %v928, %v932
    %v934 = vadd.s32 %v933, 536870912
    %v935 = vshrl.u32 %v934, 30
    %v936 = vshll.u32 %v935, 30
    %v937 = vsub.s32 %v933, %v936
    %vm938 = vcmp.lt.s32.totalorder %v937, 0
    %v939 = vsub.s32 0, %v937
    %v940 = vsel %vm938, %v939, %v937
    %v941 = vclz %v940
    %v942 = vsub.s32 %v941, 2
    %vm943 = vcmp.gt.s32.totalorder 0, %v942
    %v944 = vsel %vm943, 0, %v942
    %v945 = vsub.s32 32, %v944
    %v946 = vshll.u32 %v937, %v944
    %v947 = vshrl.u32 %v929, %v945
    %v948 = vor.u32 %v946, %v947
    %v949 = vsub.s32 4294967266, %v944
    %v950 = vadd.s32 %v949, 127
    %v951 = vshll.u32 %v950, 23
    %v952 = vor.u32 4788187, %v951
    %v953 = vand.u32 2147483647, %v952
    %v955 = vcvt.s32.f32 %v948
    %v956 = vmul.f32 %v955, %v953
    %v957 = vxor.u32 %v956, 2147483648
    %v958 = vsel %vm875, %v957, %v956
    %v959 = vsub.s32 4, %v935
    %v960 = vsel %vm875, %v959, %v935
    %v961 = vsel %vm874, %v664, %v958
    %v962 = vsel %vm874, 0, %v960
    %v963 = vcosq.f32.pop %v961
    %v964 = vsinq.f32.pop %v961
    %vm965 = vweird.f32 %v664
    %v966 = vadd.s32 %v962, 3
    %v967 = vand.u32 %v966, 3
    %vm968 = vcmp.lt.s32.totalorder %v967, 2
    %vm969 = vcmp.eq.s32.totalorder %v967, 0
    %v970 = vxor.u32 %v964, 2147483648
    %v971 = vsel %vm969, %v963, %v970
    %vm972 = vcmp.eq.s32.totalorder %v967, 2
    %v973 = vxor.u32 %v963, 2147483648
    %v974 = vsel %vm972, %v973, %v964
    %v975 = vsel %vm968, %v971, %v974
    %v976 = vsel %vm965, nan, %v975
    %977 = vst.msk [vmem:[%s1 + $0x30] sm:$0xff] %vm25, %v768
    %978 = vst.msk [vmem:[%s1 + $0x38] sm:$0xff] %vm25, %v872
    %979 = vst.msk [vmem:[%s1 + $0x40] sm:$0xff] %vm25, %v976
    %v980 = vadd.f32 %v662, 1.5707964
    %v981 = vadd.f32 %v663, 1.5707964
    %v982 = vadd.f32 %v664, 1.5707964
    %v983 = vand.u32 2147483647, %v980
    %vm984 = vcmp.le.f32.partialorder %v983, 0.7853982
    %vm985 = vcmp.lt.s32.totalorder %v980, 0
    %v986 = vand.u32 %v980, 2139095040
    %v987 = vshrl.u32 %v986, 23
    %v988 = vsub.s32 %v987, 127
    %v989 = vand.u32 2147483647, %v980
    %v990 = vand.u32 %v989, 8388607
    %v991 = vor.u32 %v990, 8388608
    %v992 = vsub.s32 0, %v991
    %v993 = vadd.s32 %v988, 1
    %vm994 = vcmp.gt.s32.totalorder %v993, 0
    %v995 = vsel %vm994, %v993, 0
    %v996 = vshrl.u32 %v995, 5
    %v997 = vand.u32 %v995, 31
    %v998 = vsub.s32 32, %v997
    %v999 = vshrl.u32 683565275, %v998
    %v1000 = vshll.u32 683565275, %v997
    %v1001 = vshrl.u32 2475754826, %v998
    %v1002 = vor.u32 %v1000, %v1001
    %v1003 = vshll.u32 2475754826, %v997
    %v1004 = vshrl.u32 2131351028, %v998
    %v1005 = vor.u32 %v1003, %v1004
    %v1006 = vshll.u32 2131351028, %v997
    %v1007 = vshrl.u32 2102212464, %v998
    %v1008 = vor.u32 %v1006, %v1007
    %v1009 = vshll.u32 2102212464, %v997
    %v1010 = vshrl.u32 920167782, %v998
    %v1011 = vor.u32 %v1009, %v1010
    %v1012 = vshll.u32 920167782, %v997
    %v1013 = vshrl.u32 1326507024, %v998
    %v1014 = vor.u32 %v1012, %v1013
    %vm1015 = vcmp.lt.s32.totalorder %v996, 1
    %vm1016 = vcmp.lt.s32.totalorder %v996, 2
    %vm1017 = vcmp.lt.s32.totalorder %v996, 3
    %vm1018 = vcmp.lt.s32.totalorder %v996, 4
    %v1019 = vsel %vm1015, %v999, %v1002
    %v1020 = vsel %vm1018, %v1008, 2102212464
    %v1021 = vsel %vm1017, %v1005, %v1020
    %v1022 = vsel %vm1016, %v1019, %v1021
    %v1023 = vsel %vm1015, %v1002, %v1005
    %v1024 = vsel %vm1018, %v1011, 920167782
    %v1025 = vsel %vm1017, %v1008, %v1024
    %v1026 = vsel %vm1016, %v1023, %v1025
    %v1027 = vsel %vm1015, %v1005, %v1008
    %v1028 = vsel %vm1018, %v1014, 1326507024
    %v1029 = vsel %vm1017, %v1011, %v1028
    %v1030 = vsel %vm1016, %v1027, %v1029
    %v1031 = vshll.u32 %v991, 8
    %v1032 = vmul.u32.u64.compose %v1031, %v1030
    %v1033 = vextract.low.u32 %v1032
    %v1034 = vextract.high.u32 %v1032
    %v1035 = vmul.u32.u64.compose %v1031, %v1026
    %v1036 = vextract.low.u32 %v1035
    %v1037 = vextract.high.u32 %v1035
    %v1038 = vmul.u32 %v1031, %v1022
    %v1039 = vadd.s32 %v1034, %v1036
    %vm1040 = vc.u32 %v1034, %v1036
    %v1041 = vadd.s32 %v1037, 1
    %v1042 = vsel %vm1040, %v1041, %v1037
    %v1043 = vadd.s32 %v1038, %v1042
    %v1044 = vadd.s32 %v1043, 536870912
    %v1045 = vshrl.u32 %v1044, 30
    %v1046 = vshll.u32 %v1045, 30
    %v1047 = vsub.s32 %v1043, %v1046
    %vm1048 = vcmp.lt.s32.totalorder %v1047, 0
    %v1049 = vsub.s32 0, %v1047
    %v1050 = vsel %vm1048, %v1049, %v1047
    %v1051 = vclz %v1050
    %v1052 = vsub.s32 %v1051, 2
    %vm1053 = vcmp.gt.s32.totalorder 0, %v1052
    %v1054 = vsel %vm1053, 0, %v1052
    %v1055 = vsub.s32 32, %v1054
    %v1056 = vshll.u32 %v1047, %v1054
    %v1057 = vshrl.u32 %v1039, %v1055
    %v1058 = vor.u32 %v1056, %v1057
    %v1059 = vsub.s32 4294967266, %v1054
    %v1060 = vadd.s32 %v1059, 127
    %v1061 = vshll.u32 %v1060, 23
    %v1062 = vor.u32 4788187, %v1061
    %v1063 = vand.u32 2147483647, %v1062
    %v1065 = vcvt.s32.f32 %v1058
    %v1066 = vmul.f32 %v1065, %v1063
    %v1067 = vxor.u32 %v1066, 2147483648
    %v1068 = vsel %vm985, %v1067, %v1066
    %v1069 = vsub.s32 4, %v1045
    %v1070 = vsel %vm985, %v1069, %v1045
    %v1071 = vsel %vm984, %v980, %v1068
    %v1072 = vsel %vm984, 0, %v1070
    %v1073 = vcosq.f32.pop %v1071
    %v1074 = vsinq.f32.pop %v1071
    %vm1075 = vweird.f32 %v980
    %v1076 = vadd.s32 %v1072, 3
    %v1077 = vand.u32 %v1076, 3
    %vm1078 = vcmp.lt.s32.totalorder %v1077, 2
    %vm1079 = vcmp.eq.s32.totalorder %v1077, 0
    %v1080 = vxor.u32 %v1074, 2147483648
    %v1081 = vsel %vm1079, %v1073, %v1080
    %vm1082 = vcmp.eq.s32.totalorder %v1077, 2
    %v1083 = vxor.u32 %v1073, 2147483648
    %v1084 = vsel %vm1082, %v1083, %v1074
    %v1085 = vsel %vm1078, %v1081, %v1084
    %v1086 = vsel %vm1075, nan, %v1085
    %v1087 = vand.u32 2147483647, %v981
    %vm1088 = vcmp.le.f32.partialorder %v1087, 0.7853982
    %vm1089 = vcmp.lt.s32.totalorder %v981, 0
    %v1090 = vand.u32 %v981, 2139095040
    %v1091 = vshrl.u32 %v1090, 23
    %v1092 = vsub.s32 %v1091, 127
    %v1093 = vand.u32 2147483647, %v981
    %v1094 = vand.u32 %v1093, 8388607
    %v1095 = vor.u32 %v1094, 8388608
    %v1096 = vsub.s32 0, %v1095
    %v1097 = vadd.s32 %v1092, 1
    %vm1098 = vcmp.gt.s32.totalorder %v1097, 0
    %v1099 = vsel %vm1098, %v1097, 0
    %v1100 = vshrl.u32 %v1099, 5
    %v1101 = vand.u32 %v1099, 31
    %v1102 = vsub.s32 32, %v1101
    %v1103 = vshrl.u32 683565275, %v1102
    %v1104 = vshll.u32 683565275, %v1101
    %v1105 = vshrl.u32 2475754826, %v1102
    %v1106 = vor.u32 %v1104, %v1105
    %v1107 = vshll.u32 2475754826, %v1101
    %v1108 = vshrl.u32 2131351028, %v1102
    %v1109 = vor.u32 %v1107, %v1108
    %v1110 = vshll.u32 2131351028, %v1101
    %v1111 = vshrl.u32 2102212464, %v1102
    %v1112 = vor.u32 %v1110, %v1111
    %v1113 = vshll.u32 2102212464, %v1101
    %v1114 = vshrl.u32 920167782, %v1102
    %v1115 = vor.u32 %v1113, %v1114
    %v1116 = vshll.u32 920167782, %v1101
    %v1117 = vshrl.u32 1326507024, %v1102
    %v1118 = vor.u32 %v1116, %v1117
    %vm1119 = vcmp.lt.s32.totalorder %v1100, 1
    %vm1120 = vcmp.lt.s32.totalorder %v1100, 2
    %vm1121 = vcmp.lt.s32.totalorder %v1100, 3
    %vm1122 = vcmp.lt.s32.totalorder %v1100, 4
    %v1123 = vsel %vm1119, %v1103, %v1106
    %v1124 = vsel %vm1122, %v1112, 2102212464
    %v1125 = vsel %vm1121, %v1109, %v1124
    %v1126 = vsel %vm1120, %v1123, %v1125
    %v1127 = vsel %vm1119, %v1106, %v1109
    %v1128 = vsel %vm1122, %v1115, 920167782
    %v1129 = vsel %vm1121, %v1112, %v1128
    %v1130 = vsel %vm1120, %v1127, %v1129
    %v1131 = vsel %vm1119, %v1109, %v1112
    %v1132 = vsel %vm1122, %v1118, 1326507024
    %v1133 = vsel %vm1121, %v1115, %v1132
    %v1134 = vsel %vm1120, %v1131, %v1133
    %v1135 = vshll.u32 %v1095, 8
    %v1136 = vmul.u32.u64.compose %v1135, %v1134
    %v1137 = vextract.low.u32 %v1136
    %v1138 = vextract.high.u32 %v1136
    %v1139 = vmul.u32.u64.compose %v1135, %v1130
    %v1140 = vextract.low.u32 %v1139
    %v1141 = vextract.high.u32 %v1139
    %v1142 = vmul.u32 %v1135, %v1126
    %v1143 = vadd.s32 %v1138, %v1140
    %vm1144 = vc.u32 %v1138, %v1140
    %v1145 = vadd.s32 %v1141, 1
    %v1146 = vsel %vm1144, %v1145, %v1141
    %v1147 = vadd.s32 %v1142, %v1146
    %v1148 = vadd.s32 %v1147, 536870912
    %v1149 = vshrl.u32 %v1148, 30
    %v1150 = vshll.u32 %v1149, 30
    %v1151 = vsub.s32 %v1147, %v1150
    %vm1152 = vcmp.lt.s32.totalorder %v1151, 0
    %v1153 = vsub.s32 0, %v1151
    %v1154 = vsel %vm1152, %v1153, %v1151
    %v1155 = vclz %v1154
    %v1156 = vsub.s32 %v1155, 2
    %vm1157 = vcmp.gt.s32.totalorder 0, %v1156
    %v1158 = vsel %vm1157, 0, %v1156
    %v1159 = vsub.s32 32, %v1158
    %v1160 = vshll.u32 %v1151, %v1158
    %v1161 = vshrl.u32 %v1143, %v1159
    %v1162 = vor.u32 %v1160, %v1161
    %v1163 = vsub.s32 4294967266, %v1158
    %v1164 = vadd.s32 %v1163, 127
    %v1165 = vshll.u32 %v1164, 23
    %v1166 = vor.u32 4788187, %v1165
    %v1167 = vand.u32 2147483647, %v1166
    %v1169 = vcvt.s32.f32 %v1162
    %v1170 = vmul.f32 %v1169, %v1167
    %v1171 = vxor.u32 %v1170, 2147483648
    %v1172 = vsel %vm1089, %v1171, %v1170
    %v1173 = vsub.s32 4, %v1149
    %v1174 = vsel %vm1089, %v1173, %v1149
    %v1175 = vsel %vm1088, %v981, %v1172
    %v1176 = vsel %vm1088, 0, %v1174
    %v1177 = vcosq.f32.pop %v1175
    %v1178 = vsinq.f32.pop %v1175
    %vm1179 = vweird.f32 %v981
    %v1180 = vadd.s32 %v1176, 3
    %v1181 = vand.u32 %v1180, 3
    %vm1182 = vcmp.lt.s32.totalorder %v1181, 2
    %vm1183 = vcmp.eq.s32.totalorder %v1181, 0
    %v1184 = vxor.u32 %v1178, 2147483648
    %v1185 = vsel %vm1183, %v1177, %v1184
    %vm1186 = vcmp.eq.s32.totalorder %v1181, 2
    %v1187 = vxor.u32 %v1177, 2147483648
    %v1188 = vsel %vm1186, %v1187, %v1178
    %v1189 = vsel %vm1182, %v1185, %v1188
    %v1190 = vsel %vm1179, nan, %v1189
    %v1191 = vand.u32 2147483647, %v982
    %vm1192 = vcmp.le.f32.partialorder %v1191, 0.7853982
    %vm1193 = vcmp.lt.s32.totalorder %v982, 0
    %v1194 = vand.u32 %v982, 2139095040
    %v1195 = vshrl.u32 %v1194, 23
    %v1196 = vsub.s32 %v1195, 127
    %v1197 = vand.u32 2147483647, %v982
    %v1198 = vand.u32 %v1197, 8388607
    %v1199 = vor.u32 %v1198, 8388608
    %v1200 = vsub.s32 0, %v1199
    %v1201 = vadd.s32 %v1196, 1
    %vm1202 = vcmp.gt.s32.totalorder %v1201, 0
    %v1203 = vsel %vm1202, %v1201, 0
    %v1204 = vshrl.u32 %v1203, 5
    %v1205 = vand.u32 %v1203, 31
    %v1206 = vsub.s32 32, %v1205
    %v1207 = vshrl.u32 683565275, %v1206
    %v1208 = vshll.u32 683565275, %v1205
    %v1209 = vshrl.u32 2475754826, %v1206
    %v1210 = vor.u32 %v1208, %v1209
    %v1211 = vshll.u32 2475754826, %v1205
    %v1212 = vshrl.u32 2131351028, %v1206
    %v1213 = vor.u32 %v1211, %v1212
    %v1214 = vshll.u32 2131351028, %v1205
    %v1215 = vshrl.u32 2102212464, %v1206
    %v1216 = vor.u32 %v1214, %v1215
    %v1217 = vshll.u32 2102212464, %v1205
    %v1218 = vshrl.u32 920167782, %v1206
    %v1219 = vor.u32 %v1217, %v1218
    %v1220 = vshll.u32 920167782, %v1205
    %v1221 = vshrl.u32 1326507024, %v1206
    %v1222 = vor.u32 %v1220, %v1221
    %vm1223 = vcmp.lt.s32.totalorder %v1204, 1
    %vm1224 = vcmp.lt.s32.totalorder %v1204, 2
    %vm1225 = vcmp.lt.s32.totalorder %v1204, 3
    %vm1226 = vcmp.lt.s32.totalorder %v1204, 4
    %v1227 = vsel %vm1223, %v1207, %v1210
    %v1228 = vsel %vm1226, %v1216, 2102212464
    %v1229 = vsel %vm1225, %v1213, %v1228
    %v1230 = vsel %vm1224, %v1227, %v1229
    %v1231 = vsel %vm1223, %v1210, %v1213
    %v1232 = vsel %vm1226, %v1219, 920167782
    %v1233 = vsel %vm1225, %v1216, %v1232
    %v1234 = vsel %vm1224, %v1231, %v1233
    %v1235 = vsel %vm1223, %v1213, %v1216
    %v1236 = vsel %vm1226, %v1222, 1326507024
    %v1237 = vsel %vm1225, %v1219, %v1236
    %v1238 = vsel %vm1224, %v1235, %v1237
    %v1239 = vshll.u32 %v1199, 8
    %v1240 = vmul.u32.u64.compose %v1239, %v1238
    %v1241 = vextract.low.u32 %v1240
    %v1242 = vextract.high.u32 %v1240
    %v1243 = vmul.u32.u64.compose %v1239, %v1234
    %v1244 = vextract.low.u32 %v1243
    %v1245 = vextract.high.u32 %v1243
    %v1246 = vmul.u32 %v1239, %v1230
    %v1247 = vadd.s32 %v1242, %v1244
    %vm1248 = vc.u32 %v1242, %v1244
    %v1249 = vadd.s32 %v1245, 1
    %v1250 = vsel %vm1248, %v1249, %v1245
    %v1251 = vadd.s32 %v1246, %v1250
    %v1252 = vadd.s32 %v1251, 536870912
    %v1253 = vshrl.u32 %v1252, 30
    %v1254 = vshll.u32 %v1253, 30
    %v1255 = vsub.s32 %v1251, %v1254
    %vm1256 = vcmp.lt.s32.totalorder %v1255, 0
    %v1257 = vsub.s32 0, %v1255
    %v1258 = vsel %vm1256, %v1257, %v1255
    %v1259 = vclz %v1258
    %v1260 = vsub.s32 %v1259, 2
    %vm1261 = vcmp.gt.s32.totalorder 0, %v1260
    %v1262 = vsel %vm1261, 0, %v1260
    %v1263 = vsub.s32 32, %v1262
    %v1264 = vshll.u32 %v1255, %v1262
    %v1265 = vshrl.u32 %v1247, %v1263
    %v1266 = vor.u32 %v1264, %v1265
    %v1267 = vsub.s32 4294967266, %v1262
    %v1268 = vadd.s32 %v1267, 127
    %v1269 = vshll.u32 %v1268, 23
    %v1270 = vor.u32 4788187, %v1269
    %v1271 = vand.u32 2147483647, %v1270
    %v1273 = vcvt.s32.f32 %v1266
    %v1274 = vmul.f32 %v1273, %v1271
    %v1275 = vxor.u32 %v1274, 2147483648
    %v1276 = vsel %vm1193, %v1275, %v1274
    %v1277 = vsub.s32 4, %v1253
    %v1278 = vsel %vm1193, %v1277, %v1253
    %v1279 = vsel %vm1192, %v982, %v1276
    %v1280 = vsel %vm1192, 0, %v1278
    %v1281 = vcosq.f32.pop %v1279
    %v1282 = vsinq.f32.pop %v1279
    %vm1283 = vweird.f32 %v982
    %v1284 = vadd.s32 %v1280, 3
    %v1285 = vand.u32 %v1284, 3
    %vm1286 = vcmp.lt.s32.totalorder %v1285, 2
    %vm1287 = vcmp.eq.s32.totalorder %v1285, 0
    %v1288 = vxor.u32 %v1282, 2147483648
    %v1289 = vsel %vm1287, %v1281, %v1288
    %vm1290 = vcmp.eq.s32.totalorder %v1285, 2
    %v1291 = vxor.u32 %v1281, 2147483648
    %v1292 = vsel %vm1290, %v1291, %v1282
    %v1293 = vsel %vm1286, %v1289, %v1292
    %v1294 = vsel %vm1283, nan, %v1293
    %1295 = vst.msk [vmem:[%s1 + $0x90] sm:$0xff] %vm25, %v1086
    %1296 = vst.msk [vmem:[%s1 + $0x98] sm:$0xff] %vm25, %v1190
    %1297 = vst.msk [vmem:[%s1 + $0xa0] sm:$0xff] %vm25, %v1294
    %v1298 = vmul.f32 %v22, 4.0
    %v1299 = vmul.f32 %v23, 4.0
    %v1300 = vmul.f32 %v24, 4.0
    %v1301 = vand.u32 2147483647, %v1298
    %vm1302 = vcmp.le.f32.partialorder %v1301, 0.7853982
    %vm1303 = vcmp.lt.s32.totalorder %v1298, 0
    %v1304 = vand.u32 %v1298, 2139095040
    %v1305 = vshrl.u32 %v1304, 23
    %v1306 = vsub.s32 %v1305, 127
    %v1307 = vand.u32 2147483647, %v1298
    %v1308 = vand.u32 %v1307, 8388607
    %v1309 = vor.u32 %v1308, 8388608
    %v1310 = vsub.s32 0, %v1309
    %v1311 = vadd.s32 %v1306, 1
    %vm1312 = vcmp.gt.s32.totalorder %v1311, 0
    %v1313 = vsel %vm1312, %v1311, 0
    %v1314 = vshrl.u32 %v1313, 5
    %v1315 = vand.u32 %v1313, 31
    %v1316 = vsub.s32 32, %v1315
    %v1317 = vshrl.u32 683565275, %v1316
    %v1318 = vshll.u32 683565275, %v1315
    %v1319 = vshrl.u32 2475754826, %v1316
    %v1320 = vor.u32 %v1318, %v1319
    %v1321 = vshll.u32 2475754826, %v1315
    %v1322 = vshrl.u32 2131351028, %v1316
    %v1323 = vor.u32 %v1321, %v1322
    %v1324 = vshll.u32 2131351028, %v1315
    %v1325 = vshrl.u32 2102212464, %v1316
    %v1326 = vor.u32 %v1324, %v1325
    %v1327 = vshll.u32 2102212464, %v1315
    %v1328 = vshrl.u32 920167782, %v1316
    %v1329 = vor.u32 %v1327, %v1328
    %v1330 = vshll.u32 920167782, %v1315
    %v1331 = vshrl.u32 1326507024, %v1316
    %v1332 = vor.u32 %v1330, %v1331
    %vm1333 = vcmp.lt.s32.totalorder %v1314, 1
    %vm1334 = vcmp.lt.s32.totalorder %v1314, 2
    %vm1335 = vcmp.lt.s32.totalorder %v1314, 3
    %vm1336 = vcmp.lt.s32.totalorder %v1314, 4
    %v1337 = vsel %vm1333, %v1317, %v1320
    %v1338 = vsel %vm1336, %v1326, 2102212464
    %v1339 = vsel %vm1335, %v1323, %v1338
    %v1340 = vsel %vm1334, %v1337, %v1339
    %v1341 = vsel %vm1333, %v1320, %v1323
    %v1342 = vsel %vm1336, %v1329, 920167782
    %v1343 = vsel %vm1335, %v1326, %v1342
    %v1344 = vsel %vm1334, %v1341, %v1343
    %v1345 = vsel %vm1333, %v1323, %v1326
    %v1346 = vsel %vm1336, %v1332, 1326507024
    %v1347 = vsel %vm1335, %v1329, %v1346
    %v1348 = vsel %vm1334, %v1345, %v1347
    %v1349 = vshll.u32 %v1309, 8
    %v1350 = vmul.u32.u64.compose %v1349, %v1348
    %v1351 = vextract.low.u32 %v1350
    %v1352 = vextract.high.u32 %v1350
    %v1353 = vmul.u32.u64.compose %v1349, %v1344
    %v1354 = vextract.low.u32 %v1353
    %v1355 = vextract.high.u32 %v1353
    %v1356 = vmul.u32 %v1349, %v1340
    %v1357 = vadd.s32 %v1352, %v1354
    %vm1358 = vc.u32 %v1352, %v1354
    %v1359 = vadd.s32 %v1355, 1
    %v1360 = vsel %vm1358, %v1359, %v1355
    %v1361 = vadd.s32 %v1356, %v1360
    %v1362 = vadd.s32 %v1361, 536870912
    %v1363 = vshrl.u32 %v1362, 30
    %v1364 = vshll.u32 %v1363, 30
    %v1365 = vsub.s32 %v1361, %v1364
    %vm1366 = vcmp.lt.s32.totalorder %v1365, 0
    %v1367 = vsub.s32 0, %v1365
    %v1368 = vsel %vm1366, %v1367, %v1365
    %v1369 = vclz %v1368
    %v1370 = vsub.s32 %v1369, 2
    %vm1371 = vcmp.gt.s32.totalorder 0, %v1370
    %v1372 = vsel %vm1371, 0, %v1370
    %v1373 = vsub.s32 32, %v1372
    %v1374 = vshll.u32 %v1365, %v1372
    %v1375 = vshrl.u32 %v1357, %v1373
    %v1376 = vor.u32 %v1374, %v1375
    %v1377 = vsub.s32 4294967266, %v1372
    %v1378 = vadd.s32 %v1377, 127
    %v1379 = vshll.u32 %v1378, 23
    %v1380 = vor.u32 4788187, %v1379
    %v1381 = vand.u32 2147483647, %v1380
    %v1383 = vcvt.s32.f32 %v1376
    %v1384 = vmul.f32 %v1383, %v1381
    %v1385 = vxor.u32 %v1384, 2147483648
    %v1386 = vsel %vm1303, %v1385, %v1384
    %v1387 = vsub.s32 4, %v1363
    %v1388 = vsel %vm1303, %v1387, %v1363
    %v1389 = vsel %vm1302, %v1298, %v1386
    %v1390 = vsel %vm1302, 0, %v1388
    %v1391 = vcosq.f32.pop %v1389
    %v1392 = vsinq.f32.pop %v1389
    %vm1393 = vweird.f32 %v1298
    %v1394 = vadd.s32 %v1390, 3
    %v1395 = vand.u32 %v1394, 3
    %vm1396 = vcmp.lt.s32.totalorder %v1395, 2
    %vm1397 = vcmp.eq.s32.totalorder %v1395, 0
    %v1398 = vxor.u32 %v1392, 2147483648
    %v1399 = vsel %vm1397, %v1391, %v1398
    %vm1400 = vcmp.eq.s32.totalorder %v1395, 2
    %v1401 = vxor.u32 %v1391, 2147483648
    %v1402 = vsel %vm1400, %v1401, %v1392
    %v1403 = vsel %vm1396, %v1399, %v1402
    %v1404 = vsel %vm1393, nan, %v1403
    %v1405 = vand.u32 2147483647, %v1299
    %vm1406 = vcmp.le.f32.partialorder %v1405, 0.7853982
    %vm1407 = vcmp.lt.s32.totalorder %v1299, 0
    %v1408 = vand.u32 %v1299, 2139095040
    %v1409 = vshrl.u32 %v1408, 23
    %v1410 = vsub.s32 %v1409, 127
    %v1411 = vand.u32 2147483647, %v1299
    %v1412 = vand.u32 %v1411, 8388607
    %v1413 = vor.u32 %v1412, 8388608
    %v1414 = vsub.s32 0, %v1413
    %v1415 = vadd.s32 %v1410, 1
    %vm1416 = vcmp.gt.s32.totalorder %v1415, 0
    %v1417 = vsel %vm1416, %v1415, 0
    %v1418 = vshrl.u32 %v1417, 5
    %v1419 = vand.u32 %v1417, 31
    %v1420 = vsub.s32 32, %v1419
    %v1421 = vshrl.u32 683565275, %v1420
    %v1422 = vshll.u32 683565275, %v1419
    %v1423 = vshrl.u32 2475754826, %v1420
    %v1424 = vor.u32 %v1422, %v1423
    %v1425 = vshll.u32 2475754826, %v1419
    %v1426 = vshrl.u32 2131351028, %v1420
    %v1427 = vor.u32 %v1425, %v1426
    %v1428 = vshll.u32 2131351028, %v1419
    %v1429 = vshrl.u32 2102212464, %v1420
    %v1430 = vor.u32 %v1428, %v1429
    %v1431 = vshll.u32 2102212464, %v1419
    %v1432 = vshrl.u32 920167782, %v1420
    %v1433 = vor.u32 %v1431, %v1432
    %v1434 = vshll.u32 920167782, %v1419
    %v1435 = vshrl.u32 1326507024, %v1420
    %v1436 = vor.u32 %v1434, %v1435
    %vm1437 = vcmp.lt.s32.totalorder %v1418, 1
    %vm1438 = vcmp.lt.s32.totalorder %v1418, 2
    %vm1439 = vcmp.lt.s32.totalorder %v1418, 3
    %vm1440 = vcmp.lt.s32.totalorder %v1418, 4
    %v1441 = vsel %vm1437, %v1421, %v1424
    %v1442 = vsel %vm1440, %v1430, 2102212464
    %v1443 = vsel %vm1439, %v1427, %v1442
    %v1444 = vsel %vm1438, %v1441, %v1443
    %v1445 = vsel %vm1437, %v1424, %v1427
    %v1446 = vsel %vm1440, %v1433, 920167782
    %v1447 = vsel %vm1439, %v1430, %v1446
    %v1448 = vsel %vm1438, %v1445, %v1447
    %v1449 = vsel %vm1437, %v1427, %v1430
    %v1450 = vsel %vm1440, %v1436, 1326507024
    %v1451 = vsel %vm1439, %v1433, %v1450
    %v1452 = vsel %vm1438, %v1449, %v1451
    %v1453 = vshll.u32 %v1413, 8
    %v1454 = vmul.u32.u64.compose %v1453, %v1452
    %v1455 = vextract.low.u32 %v1454
    %v1456 = vextract.high.u32 %v1454
    %v1457 = vmul.u32.u64.compose %v1453, %v1448
    %v1458 = vextract.low.u32 %v1457
    %v1459 = vextract.high.u32 %v1457
    %v1460 = vmul.u32 %v1453, %v1444
    %v1461 = vadd.s32 %v1456, %v1458
    %vm1462 = vc.u32 %v1456, %v1458
    %v1463 = vadd.s32 %v1459, 1
    %v1464 = vsel %vm1462, %v1463, %v1459
    %v1465 = vadd.s32 %v1460, %v1464
    %v1466 = vadd.s32 %v1465, 536870912
    %v1467 = vshrl.u32 %v1466, 30
    %v1468 = vshll.u32 %v1467, 30
    %v1469 = vsub.s32 %v1465, %v1468
    %vm1470 = vcmp.lt.s32.totalorder %v1469, 0
    %v1471 = vsub.s32 0, %v1469
    %v1472 = vsel %vm1470, %v1471, %v1469
    %v1473 = vclz %v1472
    %v1474 = vsub.s32 %v1473, 2
    %vm1475 = vcmp.gt.s32.totalorder 0, %v1474
    %v1476 = vsel %vm1475, 0, %v1474
    %v1477 = vsub.s32 32, %v1476
    %v1478 = vshll.u32 %v1469, %v1476
    %v1479 = vshrl.u32 %v1461, %v1477
    %v1480 = vor.u32 %v1478, %v1479
    %v1481 = vsub.s32 4294967266, %v1476
    %v1482 = vadd.s32 %v1481, 127
    %v1483 = vshll.u32 %v1482, 23
    %v1484 = vor.u32 4788187, %v1483
    %v1485 = vand.u32 2147483647, %v1484
    %v1487 = vcvt.s32.f32 %v1480
    %v1488 = vmul.f32 %v1487, %v1485
    %v1489 = vxor.u32 %v1488, 2147483648
    %v1490 = vsel %vm1407, %v1489, %v1488
    %v1491 = vsub.s32 4, %v1467
    %v1492 = vsel %vm1407, %v1491, %v1467
    %v1493 = vsel %vm1406, %v1299, %v1490
    %v1494 = vsel %vm1406, 0, %v1492
    %v1495 = vcosq.f32.pop %v1493
    %v1496 = vsinq.f32.pop %v1493
    %vm1497 = vweird.f32 %v1299
    %v1498 = vadd.s32 %v1494, 3
    %v1499 = vand.u32 %v1498, 3
    %vm1500 = vcmp.lt.s32.totalorder %v1499, 2
    %vm1501 = vcmp.eq.s32.totalorder %v1499, 0
    %v1502 = vxor.u32 %v1496, 2147483648
    %v1503 = vsel %vm1501, %v1495, %v1502
    %vm1504 = vcmp.eq.s32.totalorder %v1499, 2
    %v1505 = vxor.u32 %v1495, 2147483648
    %v1506 = vsel %vm1504, %v1505, %v1496
    %v1507 = vsel %vm1500, %v1503, %v1506
    %v1508 = vsel %vm1497, nan, %v1507
    %v1509 = vand.u32 2147483647, %v1300
    %vm1510 = vcmp.le.f32.partialorder %v1509, 0.7853982
    %vm1511 = vcmp.lt.s32.totalorder %v1300, 0
    %v1512 = vand.u32 %v1300, 2139095040
    %v1513 = vshrl.u32 %v1512, 23
    %v1514 = vsub.s32 %v1513, 127
    %v1515 = vand.u32 2147483647, %v1300
    %v1516 = vand.u32 %v1515, 8388607
    %v1517 = vor.u32 %v1516, 8388608
    %v1518 = vsub.s32 0, %v1517
    %v1519 = vadd.s32 %v1514, 1
    %vm1520 = vcmp.gt.s32.totalorder %v1519, 0
    %v1521 = vsel %vm1520, %v1519, 0
    %v1522 = vshrl.u32 %v1521, 5
    %v1523 = vand.u32 %v1521, 31
    %v1524 = vsub.s32 32, %v1523
    %v1525 = vshrl.u32 683565275, %v1524
    %v1526 = vshll.u32 683565275, %v1523
    %v1527 = vshrl.u32 2475754826, %v1524
    %v1528 = vor.u32 %v1526, %v1527
    %v1529 = vshll.u32 2475754826, %v1523
    %v1530 = vshrl.u32 2131351028, %v1524
    %v1531 = vor.u32 %v1529, %v1530
    %v1532 = vshll.u32 2131351028, %v1523
    %v1533 = vshrl.u32 2102212464, %v1524
    %v1534 = vor.u32 %v1532, %v1533
    %v1535 = vshll.u32 2102212464, %v1523
    %v1536 = vshrl.u32 920167782, %v1524
    %v1537 = vor.u32 %v1535, %v1536
    %v1538 = vshll.u32 920167782, %v1523
    %v1539 = vshrl.u32 1326507024, %v1524
    %v1540 = vor.u32 %v1538, %v1539
    %vm1541 = vcmp.lt.s32.totalorder %v1522, 1
    %vm1542 = vcmp.lt.s32.totalorder %v1522, 2
    %vm1543 = vcmp.lt.s32.totalorder %v1522, 3
    %vm1544 = vcmp.lt.s32.totalorder %v1522, 4
    %v1545 = vsel %vm1541, %v1525, %v1528
    %v1546 = vsel %vm1544, %v1534, 2102212464
    %v1547 = vsel %vm1543, %v1531, %v1546
    %v1548 = vsel %vm1542, %v1545, %v1547
    %v1549 = vsel %vm1541, %v1528, %v1531
    %v1550 = vsel %vm1544, %v1537, 920167782
    %v1551 = vsel %vm1543, %v1534, %v1550
    %v1552 = vsel %vm1542, %v1549, %v1551
    %v1553 = vsel %vm1541, %v1531, %v1534
    %v1554 = vsel %vm1544, %v1540, 1326507024
    %v1555 = vsel %vm1543, %v1537, %v1554
    %v1556 = vsel %vm1542, %v1553, %v1555
    %v1557 = vshll.u32 %v1517, 8
    %v1558 = vmul.u32.u64.compose %v1557, %v1556
    %v1559 = vextract.low.u32 %v1558
    %v1560 = vextract.high.u32 %v1558
    %v1561 = vmul.u32.u64.compose %v1557, %v1552
    %v1562 = vextract.low.u32 %v1561
    %v1563 = vextract.high.u32 %v1561
    %v1564 = vmul.u32 %v1557, %v1548
    %v1565 = vadd.s32 %v1560, %v1562
    %vm1566 = vc.u32 %v1560, %v1562
    %v1567 = vadd.s32 %v1563, 1
    %v1568 = vsel %vm1566, %v1567, %v1563
    %v1569 = vadd.s32 %v1564, %v1568
    %v1570 = vadd.s32 %v1569, 536870912
    %v1571 = vshrl.u32 %v1570, 30
    %v1572 = vshll.u32 %v1571, 30
    %v1573 = vsub.s32 %v1569, %v1572
    %vm1574 = vcmp.lt.s32.totalorder %v1573, 0
    %v1575 = vsub.s32 0, %v1573
    %v1576 = vsel %vm1574, %v1575, %v1573
    %v1577 = vclz %v1576
    %v1578 = vsub.s32 %v1577, 2
    %vm1579 = vcmp.gt.s32.totalorder 0, %v1578
    %v1580 = vsel %vm1579, 0, %v1578
    %v1581 = vsub.s32 32, %v1580
    %v1582 = vshll.u32 %v1573, %v1580
    %v1583 = vshrl.u32 %v1565, %v1581
    %v1584 = vor.u32 %v1582, %v1583
    %v1585 = vsub.s32 4294967266, %v1580
    %v1586 = vadd.s32 %v1585, 127
    %v1587 = vshll.u32 %v1586, 23
    %v1588 = vor.u32 4788187, %v1587
    %v1589 = vand.u32 2147483647, %v1588
    %v1591 = vcvt.s32.f32 %v1584
    %v1592 = vmul.f32 %v1591, %v1589
    %v1593 = vxor.u32 %v1592, 2147483648
    %v1594 = vsel %vm1511, %v1593, %v1592
    %v1595 = vsub.s32 4, %v1571
    %v1596 = vsel %vm1511, %v1595, %v1571
    %v1597 = vsel %vm1510, %v1300, %v1594
    %v1598 = vsel %vm1510, 0, %v1596
    %v1599 = vcosq.f32.pop %v1597
    %v1600 = vsinq.f32.pop %v1597
    %vm1601 = vweird.f32 %v1300
    %v1602 = vadd.s32 %v1598, 3
    %v1603 = vand.u32 %v1602, 3
    %vm1604 = vcmp.lt.s32.totalorder %v1603, 2
    %vm1605 = vcmp.eq.s32.totalorder %v1603, 0
    %v1606 = vxor.u32 %v1600, 2147483648
    %v1607 = vsel %vm1605, %v1599, %v1606
    %vm1608 = vcmp.eq.s32.totalorder %v1603, 2
    %v1609 = vxor.u32 %v1599, 2147483648
    %v1610 = vsel %vm1608, %v1609, %v1600
    %v1611 = vsel %vm1604, %v1607, %v1610
    %v1612 = vsel %vm1601, nan, %v1611
    %1613 = vst.msk [vmem:[%s1 + $0x48] sm:$0xff] %vm25, %v1404
    %1614 = vst.msk [vmem:[%s1 + $0x50] sm:$0xff] %vm25, %v1508
    %1615 = vst.msk [vmem:[%s1 + $0x58] sm:$0xff] %vm25, %v1612
    %v1616 = vadd.f32 %v1298, 1.5707964
    %v1617 = vadd.f32 %v1299, 1.5707964
    %v1618 = vadd.f32 %v1300, 1.5707964
    %v1619 = vand.u32 2147483647, %v1616
    %vm1620 = vcmp.le.f32.partialorder %v1619, 0.7853982
    %vm1621 = vcmp.lt.s32.totalorder %v1616, 0
    %v1622 = vand.u32 %v1616, 2139095040
    %v1623 = vshrl.u32 %v1622, 23
    %v1624 = vsub.s32 %v1623, 127
    %v1625 = vand.u32 2147483647, %v1616
    %v1626 = vand.u32 %v1625, 8388607
    %v1627 = vor.u32 %v1626, 8388608
    %v1628 = vsub.s32 0, %v1627
    %v1629 = vadd.s32 %v1624, 1
    %vm1630 = vcmp.gt.s32.totalorder %v1629, 0
    %v1631 = vsel %vm1630, %v1629, 0
    %v1632 = vshrl.u32 %v1631, 5
    %v1633 = vand.u32 %v1631, 31
    %v1634 = vsub.s32 32, %v1633
    %v1635 = vshrl.u32 683565275, %v1634
    %v1636 = vshll.u32 683565275, %v1633
    %v1637 = vshrl.u32 2475754826, %v1634
    %v1638 = vor.u32 %v1636, %v1637
    %v1639 = vshll.u32 2475754826, %v1633
    %v1640 = vshrl.u32 2131351028, %v1634
    %v1641 = vor.u32 %v1639, %v1640
    %v1642 = vshll.u32 2131351028, %v1633
    %v1643 = vshrl.u32 2102212464, %v1634
    %v1644 = vor.u32 %v1642, %v1643
    %v1645 = vshll.u32 2102212464, %v1633
    %v1646 = vshrl.u32 920167782, %v1634
    %v1647 = vor.u32 %v1645, %v1646
    %v1648 = vshll.u32 920167782, %v1633
    %v1649 = vshrl.u32 1326507024, %v1634
    %v1650 = vor.u32 %v1648, %v1649
    %vm1651 = vcmp.lt.s32.totalorder %v1632, 1
    %vm1652 = vcmp.lt.s32.totalorder %v1632, 2
    %vm1653 = vcmp.lt.s32.totalorder %v1632, 3
    %vm1654 = vcmp.lt.s32.totalorder %v1632, 4
    %v1655 = vsel %vm1651, %v1635, %v1638
    %v1656 = vsel %vm1654, %v1644, 2102212464
    %v1657 = vsel %vm1653, %v1641, %v1656
    %v1658 = vsel %vm1652, %v1655, %v1657
    %v1659 = vsel %vm1651, %v1638, %v1641
    %v1660 = vsel %vm1654, %v1647, 920167782
    %v1661 = vsel %vm1653, %v1644, %v1660
    %v1662 = vsel %vm1652, %v1659, %v1661
    %v1663 = vsel %vm1651, %v1641, %v1644
    %v1664 = vsel %vm1654, %v1650, 1326507024
    %v1665 = vsel %vm1653, %v1647, %v1664
    %v1666 = vsel %vm1652, %v1663, %v1665
    %v1667 = vshll.u32 %v1627, 8
    %v1668 = vmul.u32.u64.compose %v1667, %v1666
    %v1669 = vextract.low.u32 %v1668
    %v1670 = vextract.high.u32 %v1668
    %v1671 = vmul.u32.u64.compose %v1667, %v1662
    %v1672 = vextract.low.u32 %v1671
    %v1673 = vextract.high.u32 %v1671
    %v1674 = vmul.u32 %v1667, %v1658
    %v1675 = vadd.s32 %v1670, %v1672
    %vm1676 = vc.u32 %v1670, %v1672
    %v1677 = vadd.s32 %v1673, 1
    %v1678 = vsel %vm1676, %v1677, %v1673
    %v1679 = vadd.s32 %v1674, %v1678
    %v1680 = vadd.s32 %v1679, 536870912
    %v1681 = vshrl.u32 %v1680, 30
    %v1682 = vshll.u32 %v1681, 30
    %v1683 = vsub.s32 %v1679, %v1682
    %vm1684 = vcmp.lt.s32.totalorder %v1683, 0
    %v1685 = vsub.s32 0, %v1683
    %v1686 = vsel %vm1684, %v1685, %v1683
    %v1687 = vclz %v1686
    %v1688 = vsub.s32 %v1687, 2
    %vm1689 = vcmp.gt.s32.totalorder 0, %v1688
    %v1690 = vsel %vm1689, 0, %v1688
    %v1691 = vsub.s32 32, %v1690
    %v1692 = vshll.u32 %v1683, %v1690
    %v1693 = vshrl.u32 %v1675, %v1691
    %v1694 = vor.u32 %v1692, %v1693
    %v1695 = vsub.s32 4294967266, %v1690
    %v1696 = vadd.s32 %v1695, 127
    %v1697 = vshll.u32 %v1696, 23
    %v1698 = vor.u32 4788187, %v1697
    %v1699 = vand.u32 2147483647, %v1698
    %v1701 = vcvt.s32.f32 %v1694
    %v1702 = vmul.f32 %v1701, %v1699
    %v1703 = vxor.u32 %v1702, 2147483648
    %v1704 = vsel %vm1621, %v1703, %v1702
    %v1705 = vsub.s32 4, %v1681
    %v1706 = vsel %vm1621, %v1705, %v1681
    %v1707 = vsel %vm1620, %v1616, %v1704
    %v1708 = vsel %vm1620, 0, %v1706
    %v1709 = vcosq.f32.pop %v1707
    %v1710 = vsinq.f32.pop %v1707
    %vm1711 = vweird.f32 %v1616
    %v1712 = vadd.s32 %v1708, 3
    %v1713 = vand.u32 %v1712, 3
    %vm1714 = vcmp.lt.s32.totalorder %v1713, 2
    %vm1715 = vcmp.eq.s32.totalorder %v1713, 0
    %v1716 = vxor.u32 %v1710, 2147483648
    %v1717 = vsel %vm1715, %v1709, %v1716
    %vm1718 = vcmp.eq.s32.totalorder %v1713, 2
    %v1719 = vxor.u32 %v1709, 2147483648
    %v1720 = vsel %vm1718, %v1719, %v1710
    %v1721 = vsel %vm1714, %v1717, %v1720
    %v1722 = vsel %vm1711, nan, %v1721
    %v1723 = vand.u32 2147483647, %v1617
    %vm1724 = vcmp.le.f32.partialorder %v1723, 0.7853982
    %vm1725 = vcmp.lt.s32.totalorder %v1617, 0
    %v1726 = vand.u32 %v1617, 2139095040
    %v1727 = vshrl.u32 %v1726, 23
    %v1728 = vsub.s32 %v1727, 127
    %v1729 = vand.u32 2147483647, %v1617
    %v1730 = vand.u32 %v1729, 8388607
    %v1731 = vor.u32 %v1730, 8388608
    %v1732 = vsub.s32 0, %v1731
    %v1733 = vadd.s32 %v1728, 1
    %vm1734 = vcmp.gt.s32.totalorder %v1733, 0
    %v1735 = vsel %vm1734, %v1733, 0
    %v1736 = vshrl.u32 %v1735, 5
    %v1737 = vand.u32 %v1735, 31
    %v1738 = vsub.s32 32, %v1737
    %v1739 = vshrl.u32 683565275, %v1738
    %v1740 = vshll.u32 683565275, %v1737
    %v1741 = vshrl.u32 2475754826, %v1738
    %v1742 = vor.u32 %v1740, %v1741
    %v1743 = vshll.u32 2475754826, %v1737
    %v1744 = vshrl.u32 2131351028, %v1738
    %v1745 = vor.u32 %v1743, %v1744
    %v1746 = vshll.u32 2131351028, %v1737
    %v1747 = vshrl.u32 2102212464, %v1738
    %v1748 = vor.u32 %v1746, %v1747
    %v1749 = vshll.u32 2102212464, %v1737
    %v1750 = vshrl.u32 920167782, %v1738
    %v1751 = vor.u32 %v1749, %v1750
    %v1752 = vshll.u32 920167782, %v1737
    %v1753 = vshrl.u32 1326507024, %v1738
    %v1754 = vor.u32 %v1752, %v1753
    %vm1755 = vcmp.lt.s32.totalorder %v1736, 1
    %vm1756 = vcmp.lt.s32.totalorder %v1736, 2
    %vm1757 = vcmp.lt.s32.totalorder %v1736, 3
    %vm1758 = vcmp.lt.s32.totalorder %v1736, 4
    %v1759 = vsel %vm1755, %v1739, %v1742
    %v1760 = vsel %vm1758, %v1748, 2102212464
    %v1761 = vsel %vm1757, %v1745, %v1760
    %v1762 = vsel %vm1756, %v1759, %v1761
    %v1763 = vsel %vm1755, %v1742, %v1745
    %v1764 = vsel %vm1758, %v1751, 920167782
    %v1765 = vsel %vm1757, %v1748, %v1764
    %v1766 = vsel %vm1756, %v1763, %v1765
    %v1767 = vsel %vm1755, %v1745, %v1748
    %v1768 = vsel %vm1758, %v1754, 1326507024
    %v1769 = vsel %vm1757, %v1751, %v1768
    %v1770 = vsel %vm1756, %v1767, %v1769
    %v1771 = vshll.u32 %v1731, 8
    %v1772 = vmul.u32.u64.compose %v1771, %v1770
    %v1773 = vextract.low.u32 %v1772
    %v1774 = vextract.high.u32 %v1772
    %v1775 = vmul.u32.u64.compose %v1771, %v1766
    %v1776 = vextract.low.u32 %v1775
    %v1777 = vextract.high.u32 %v1775
    %v1778 = vmul.u32 %v1771, %v1762
    %v1779 = vadd.s32 %v1774, %v1776
    %vm1780 = vc.u32 %v1774, %v1776
    %v1781 = vadd.s32 %v1777, 1
    %v1782 = vsel %vm1780, %v1781, %v1777
    %v1783 = vadd.s32 %v1778, %v1782
    %v1784 = vadd.s32 %v1783, 536870912
    %v1785 = vshrl.u32 %v1784, 30
    %v1786 = vshll.u32 %v1785, 30
    %v1787 = vsub.s32 %v1783, %v1786
    %vm1788 = vcmp.lt.s32.totalorder %v1787, 0
    %v1789 = vsub.s32 0, %v1787
    %v1790 = vsel %vm1788, %v1789, %v1787
    %v1791 = vclz %v1790
    %v1792 = vsub.s32 %v1791, 2
    %vm1793 = vcmp.gt.s32.totalorder 0, %v1792
    %v1794 = vsel %vm1793, 0, %v1792
    %v1795 = vsub.s32 32, %v1794
    %v1796 = vshll.u32 %v1787, %v1794
    %v1797 = vshrl.u32 %v1779, %v1795
    %v1798 = vor.u32 %v1796, %v1797
    %v1799 = vsub.s32 4294967266, %v1794
    %v1800 = vadd.s32 %v1799, 127
    %v1801 = vshll.u32 %v1800, 23
    %v1802 = vor.u32 4788187, %v1801
    %v1803 = vand.u32 2147483647, %v1802
    %v1805 = vcvt.s32.f32 %v1798
    %v1806 = vmul.f32 %v1805, %v1803
    %v1807 = vxor.u32 %v1806, 2147483648
    %v1808 = vsel %vm1725, %v1807, %v1806
    %v1809 = vsub.s32 4, %v1785
    %v1810 = vsel %vm1725, %v1809, %v1785
    %v1811 = vsel %vm1724, %v1617, %v1808
    %v1812 = vsel %vm1724, 0, %v1810
    %v1813 = vcosq.f32.pop %v1811
    %v1814 = vsinq.f32.pop %v1811
    %vm1815 = vweird.f32 %v1617
    %v1816 = vadd.s32 %v1812, 3
    %v1817 = vand.u32 %v1816, 3
    %vm1818 = vcmp.lt.s32.totalorder %v1817, 2
    %vm1819 = vcmp.eq.s32.totalorder %v1817, 0
    %v1820 = vxor.u32 %v1814, 2147483648
    %v1821 = vsel %vm1819, %v1813, %v1820
    %vm1822 = vcmp.eq.s32.totalorder %v1817, 2
    %v1823 = vxor.u32 %v1813, 2147483648
    %v1824 = vsel %vm1822, %v1823, %v1814
    %v1825 = vsel %vm1818, %v1821, %v1824
    %v1826 = vsel %vm1815, nan, %v1825
    %v1827 = vand.u32 2147483647, %v1618
    %vm1828 = vcmp.le.f32.partialorder %v1827, 0.7853982
    %vm1829 = vcmp.lt.s32.totalorder %v1618, 0
    %v1830 = vand.u32 %v1618, 2139095040
    %v1831 = vshrl.u32 %v1830, 23
    %v1832 = vsub.s32 %v1831, 127
    %v1833 = vand.u32 2147483647, %v1618
    %v1834 = vand.u32 %v1833, 8388607
    %v1835 = vor.u32 %v1834, 8388608
    %v1836 = vsub.s32 0, %v1835
    %v1837 = vadd.s32 %v1832, 1
    %vm1838 = vcmp.gt.s32.totalorder %v1837, 0
    %v1839 = vsel %vm1838, %v1837, 0
    %v1840 = vshrl.u32 %v1839, 5
    %v1841 = vand.u32 %v1839, 31
    %v1842 = vsub.s32 32, %v1841
    %v1843 = vshrl.u32 683565275, %v1842
    %v1844 = vshll.u32 683565275, %v1841
    %v1845 = vshrl.u32 2475754826, %v1842
    %v1846 = vor.u32 %v1844, %v1845
    %v1847 = vshll.u32 2475754826, %v1841
    %v1848 = vshrl.u32 2131351028, %v1842
    %v1849 = vor.u32 %v1847, %v1848
    %v1850 = vshll.u32 2131351028, %v1841
    %v1851 = vshrl.u32 2102212464, %v1842
    %v1852 = vor.u32 %v1850, %v1851
    %v1853 = vshll.u32 2102212464, %v1841
    %v1854 = vshrl.u32 920167782, %v1842
    %v1855 = vor.u32 %v1853, %v1854
    %v1856 = vshll.u32 920167782, %v1841
    %v1857 = vshrl.u32 1326507024, %v1842
    %v1858 = vor.u32 %v1856, %v1857
    %vm1859 = vcmp.lt.s32.totalorder %v1840, 1
    %vm1860 = vcmp.lt.s32.totalorder %v1840, 2
    %vm1861 = vcmp.lt.s32.totalorder %v1840, 3
    %vm1862 = vcmp.lt.s32.totalorder %v1840, 4
    %v1863 = vsel %vm1859, %v1843, %v1846
    %v1864 = vsel %vm1862, %v1852, 2102212464
    %v1865 = vsel %vm1861, %v1849, %v1864
    %v1866 = vsel %vm1860, %v1863, %v1865
    %v1867 = vsel %vm1859, %v1846, %v1849
    %v1868 = vsel %vm1862, %v1855, 920167782
    %v1869 = vsel %vm1861, %v1852, %v1868
    %v1870 = vsel %vm1860, %v1867, %v1869
    %v1871 = vsel %vm1859, %v1849, %v1852
    %v1872 = vsel %vm1862, %v1858, 1326507024
    %v1873 = vsel %vm1861, %v1855, %v1872
    %v1874 = vsel %vm1860, %v1871, %v1873
    %v1875 = vshll.u32 %v1835, 8
    %v1876 = vmul.u32.u64.compose %v1875, %v1874
    %v1877 = vextract.low.u32 %v1876
    %v1878 = vextract.high.u32 %v1876
    %v1879 = vmul.u32.u64.compose %v1875, %v1870
    %v1880 = vextract.low.u32 %v1879
    %v1881 = vextract.high.u32 %v1879
    %v1882 = vmul.u32 %v1875, %v1866
    %v1883 = vadd.s32 %v1878, %v1880
    %vm1884 = vc.u32 %v1878, %v1880
    %v1885 = vadd.s32 %v1881, 1
    %v1886 = vsel %vm1884, %v1885, %v1881
    %v1887 = vadd.s32 %v1882, %v1886
    %v1888 = vadd.s32 %v1887, 536870912
    %v1889 = vshrl.u32 %v1888, 30
    %v1890 = vshll.u32 %v1889, 30
    %v1891 = vsub.s32 %v1887, %v1890
    %vm1892 = vcmp.lt.s32.totalorder %v1891, 0
    %v1893 = vsub.s32 0, %v1891
    %v1894 = vsel %vm1892, %v1893, %v1891
    %v1895 = vclz %v1894
    %v1896 = vsub.s32 %v1895, 2
    %vm1897 = vcmp.gt.s32.totalorder 0, %v1896
    %v1898 = vsel %vm1897, 0, %v1896
    %v1899 = vsub.s32 32, %v1898
    %v1900 = vshll.u32 %v1891, %v1898
    %v1901 = vshrl.u32 %v1883, %v1899
    %v1902 = vor.u32 %v1900, %v1901
    %v1903 = vsub.s32 4294967266, %v1898
    %v1904 = vadd.s32 %v1903, 127
    %v1905 = vshll.u32 %v1904, 23
    %v1906 = vor.u32 4788187, %v1905
    %v1907 = vand.u32 2147483647, %v1906
    %v1909 = vcvt.s32.f32 %v1902
    %v1910 = vmul.f32 %v1909, %v1907
    %v1911 = vxor.u32 %v1910, 2147483648
    %v1912 = vsel %vm1829, %v1911, %v1910
    %v1913 = vsub.s32 4, %v1889
    %v1914 = vsel %vm1829, %v1913, %v1889
    %v1915 = vsel %vm1828, %v1618, %v1912
    %v1916 = vsel %vm1828, 0, %v1914
    %v1917 = vcosq.f32.pop %v1915
    %v1918 = vsinq.f32.pop %v1915
    %vm1919 = vweird.f32 %v1618
    %v1920 = vadd.s32 %v1916, 3
    %v1921 = vand.u32 %v1920, 3
    %vm1922 = vcmp.lt.s32.totalorder %v1921, 2
    %vm1923 = vcmp.eq.s32.totalorder %v1921, 0
    %v1924 = vxor.u32 %v1918, 2147483648
    %v1925 = vsel %vm1923, %v1917, %v1924
    %vm1926 = vcmp.eq.s32.totalorder %v1921, 2
    %v1927 = vxor.u32 %v1917, 2147483648
    %v1928 = vsel %vm1926, %v1927, %v1918
    %v1929 = vsel %vm1922, %v1925, %v1928
    %v1930 = vsel %vm1919, nan, %v1929
    %1931 = vst.msk [vmem:[%s1 + $0xa8] sm:$0xff] %vm25, %v1722
    %1932 = vst.msk [vmem:[%s1 + $0xb0] sm:$0xff] %vm25, %v1826
    %1933 = vst.msk [vmem:[%s1 + $0xb8] sm:$0xff] %vm25, %v1930
    %v1934 = vmul.f32 %v22, 8.0
    %v1935 = vmul.f32 %v23, 8.0
    %v1936 = vmul.f32 %v24, 8.0
    %v1937 = vand.u32 2147483647, %v1934
    %vm1938 = vcmp.le.f32.partialorder %v1937, 0.7853982
    %vm1939 = vcmp.lt.s32.totalorder %v1934, 0
    %v1940 = vand.u32 %v1934, 2139095040
    %v1941 = vshrl.u32 %v1940, 23
    %v1942 = vsub.s32 %v1941, 127
    %v1943 = vand.u32 2147483647, %v1934
    %v1944 = vand.u32 %v1943, 8388607
    %v1945 = vor.u32 %v1944, 8388608
    %v1946 = vsub.s32 0, %v1945
    %v1947 = vadd.s32 %v1942, 1
    %vm1948 = vcmp.gt.s32.totalorder %v1947, 0
    %v1949 = vsel %vm1948, %v1947, 0
    %v1950 = vshrl.u32 %v1949, 5
    %v1951 = vand.u32 %v1949, 31
    %v1952 = vsub.s32 32, %v1951
    %v1953 = vshrl.u32 683565275, %v1952
    %v1954 = vshll.u32 683565275, %v1951
    %v1955 = vshrl.u32 2475754826, %v1952
    %v1956 = vor.u32 %v1954, %v1955
    %v1957 = vshll.u32 2475754826, %v1951
    %v1958 = vshrl.u32 2131351028, %v1952
    %v1959 = vor.u32 %v1957, %v1958
    %v1960 = vshll.u32 2131351028, %v1951
    %v1961 = vshrl.u32 2102212464, %v1952
    %v1962 = vor.u32 %v1960, %v1961
    %v1963 = vshll.u32 2102212464, %v1951
    %v1964 = vshrl.u32 920167782, %v1952
    %v1965 = vor.u32 %v1963, %v1964
    %v1966 = vshll.u32 920167782, %v1951
    %v1967 = vshrl.u32 1326507024, %v1952
    %v1968 = vor.u32 %v1966, %v1967
    %vm1969 = vcmp.lt.s32.totalorder %v1950, 1
    %vm1970 = vcmp.lt.s32.totalorder %v1950, 2
    %vm1971 = vcmp.lt.s32.totalorder %v1950, 3
    %vm1972 = vcmp.lt.s32.totalorder %v1950, 4
    %v1973 = vsel %vm1969, %v1953, %v1956
    %v1974 = vsel %vm1972, %v1962, 2102212464
    %v1975 = vsel %vm1971, %v1959, %v1974
    %v1976 = vsel %vm1970, %v1973, %v1975
    %v1977 = vsel %vm1969, %v1956, %v1959
    %v1978 = vsel %vm1972, %v1965, 920167782
    %v1979 = vsel %vm1971, %v1962, %v1978
    %v1980 = vsel %vm1970, %v1977, %v1979
    %v1981 = vsel %vm1969, %v1959, %v1962
    %v1982 = vsel %vm1972, %v1968, 1326507024
    %v1983 = vsel %vm1971, %v1965, %v1982
    %v1984 = vsel %vm1970, %v1981, %v1983
    %v1985 = vshll.u32 %v1945, 8
    %v1986 = vmul.u32.u64.compose %v1985, %v1984
    %v1987 = vextract.low.u32 %v1986
    %v1988 = vextract.high.u32 %v1986
    %v1989 = vmul.u32.u64.compose %v1985, %v1980
    %v1990 = vextract.low.u32 %v1989
    %v1991 = vextract.high.u32 %v1989
    %v1992 = vmul.u32 %v1985, %v1976
    %v1993 = vadd.s32 %v1988, %v1990
    %vm1994 = vc.u32 %v1988, %v1990
    %v1995 = vadd.s32 %v1991, 1
    %v1996 = vsel %vm1994, %v1995, %v1991
    %v1997 = vadd.s32 %v1992, %v1996
    %v1998 = vadd.s32 %v1997, 536870912
    %v1999 = vshrl.u32 %v1998, 30
    %v2000 = vshll.u32 %v1999, 30
    %v2001 = vsub.s32 %v1997, %v2000
    %vm2002 = vcmp.lt.s32.totalorder %v2001, 0
    %v2003 = vsub.s32 0, %v2001
    %v2004 = vsel %vm2002, %v2003, %v2001
    %v2005 = vclz %v2004
    %v2006 = vsub.s32 %v2005, 2
    %vm2007 = vcmp.gt.s32.totalorder 0, %v2006
    %v2008 = vsel %vm2007, 0, %v2006
    %v2009 = vsub.s32 32, %v2008
    %v2010 = vshll.u32 %v2001, %v2008
    %v2011 = vshrl.u32 %v1993, %v2009
    %v2012 = vor.u32 %v2010, %v2011
    %v2013 = vsub.s32 4294967266, %v2008
    %v2014 = vadd.s32 %v2013, 127
    %v2015 = vshll.u32 %v2014, 23
    %v2016 = vor.u32 4788187, %v2015
    %v2017 = vand.u32 2147483647, %v2016
    %v2019 = vcvt.s32.f32 %v2012
    %v2020 = vmul.f32 %v2019, %v2017
    %v2021 = vxor.u32 %v2020, 2147483648
    %v2022 = vsel %vm1939, %v2021, %v2020
    %v2023 = vsub.s32 4, %v1999
    %v2024 = vsel %vm1939, %v2023, %v1999
    %v2025 = vsel %vm1938, %v1934, %v2022
    %v2026 = vsel %vm1938, 0, %v2024
    %v2027 = vcosq.f32.pop %v2025
    %v2028 = vsinq.f32.pop %v2025
    %vm2029 = vweird.f32 %v1934
    %v2030 = vadd.s32 %v2026, 3
    %v2031 = vand.u32 %v2030, 3
    %vm2032 = vcmp.lt.s32.totalorder %v2031, 2
    %vm2033 = vcmp.eq.s32.totalorder %v2031, 0
    %v2034 = vxor.u32 %v2028, 2147483648
    %v2035 = vsel %vm2033, %v2027, %v2034
    %vm2036 = vcmp.eq.s32.totalorder %v2031, 2
    %v2037 = vxor.u32 %v2027, 2147483648
    %v2038 = vsel %vm2036, %v2037, %v2028
    %v2039 = vsel %vm2032, %v2035, %v2038
    %v2040 = vsel %vm2029, nan, %v2039
    %v2041 = vand.u32 2147483647, %v1935
    %vm2042 = vcmp.le.f32.partialorder %v2041, 0.7853982
    %vm2043 = vcmp.lt.s32.totalorder %v1935, 0
    %v2044 = vand.u32 %v1935, 2139095040
    %v2045 = vshrl.u32 %v2044, 23
    %v2046 = vsub.s32 %v2045, 127
    %v2047 = vand.u32 2147483647, %v1935
    %v2048 = vand.u32 %v2047, 8388607
    %v2049 = vor.u32 %v2048, 8388608
    %v2050 = vsub.s32 0, %v2049
    %v2051 = vadd.s32 %v2046, 1
    %vm2052 = vcmp.gt.s32.totalorder %v2051, 0
    %v2053 = vsel %vm2052, %v2051, 0
    %v2054 = vshrl.u32 %v2053, 5
    %v2055 = vand.u32 %v2053, 31
    %v2056 = vsub.s32 32, %v2055
    %v2057 = vshrl.u32 683565275, %v2056
    %v2058 = vshll.u32 683565275, %v2055
    %v2059 = vshrl.u32 2475754826, %v2056
    %v2060 = vor.u32 %v2058, %v2059
    %v2061 = vshll.u32 2475754826, %v2055
    %v2062 = vshrl.u32 2131351028, %v2056
    %v2063 = vor.u32 %v2061, %v2062
    %v2064 = vshll.u32 2131351028, %v2055
    %v2065 = vshrl.u32 2102212464, %v2056
    %v2066 = vor.u32 %v2064, %v2065
    %v2067 = vshll.u32 2102212464, %v2055
    %v2068 = vshrl.u32 920167782, %v2056
    %v2069 = vor.u32 %v2067, %v2068
    %v2070 = vshll.u32 920167782, %v2055
    %v2071 = vshrl.u32 1326507024, %v2056
    %v2072 = vor.u32 %v2070, %v2071
    %vm2073 = vcmp.lt.s32.totalorder %v2054, 1
    %vm2074 = vcmp.lt.s32.totalorder %v2054, 2
    %vm2075 = vcmp.lt.s32.totalorder %v2054, 3
    %vm2076 = vcmp.lt.s32.totalorder %v2054, 4
    %v2077 = vsel %vm2073, %v2057, %v2060
    %v2078 = vsel %vm2076, %v2066, 2102212464
    %v2079 = vsel %vm2075, %v2063, %v2078
    %v2080 = vsel %vm2074, %v2077, %v2079
    %v2081 = vsel %vm2073, %v2060, %v2063
    %v2082 = vsel %vm2076, %v2069, 920167782
    %v2083 = vsel %vm2075, %v2066, %v2082
    %v2084 = vsel %vm2074, %v2081, %v2083
    %v2085 = vsel %vm2073, %v2063, %v2066
    %v2086 = vsel %vm2076, %v2072, 1326507024
    %v2087 = vsel %vm2075, %v2069, %v2086
    %v2088 = vsel %vm2074, %v2085, %v2087
    %v2089 = vshll.u32 %v2049, 8
    %v2090 = vmul.u32.u64.compose %v2089, %v2088
    %v2091 = vextract.low.u32 %v2090
    %v2092 = vextract.high.u32 %v2090
    %v2093 = vmul.u32.u64.compose %v2089, %v2084
    %v2094 = vextract.low.u32 %v2093
    %v2095 = vextract.high.u32 %v2093
    %v2096 = vmul.u32 %v2089, %v2080
    %v2097 = vadd.s32 %v2092, %v2094
    %vm2098 = vc.u32 %v2092, %v2094
    %v2099 = vadd.s32 %v2095, 1
    %v2100 = vsel %vm2098, %v2099, %v2095
    %v2101 = vadd.s32 %v2096, %v2100
    %v2102 = vadd.s32 %v2101, 536870912
    %v2103 = vshrl.u32 %v2102, 30
    %v2104 = vshll.u32 %v2103, 30
    %v2105 = vsub.s32 %v2101, %v2104
    %vm2106 = vcmp.lt.s32.totalorder %v2105, 0
    %v2107 = vsub.s32 0, %v2105
    %v2108 = vsel %vm2106, %v2107, %v2105
    %v2109 = vclz %v2108
    %v2110 = vsub.s32 %v2109, 2
    %vm2111 = vcmp.gt.s32.totalorder 0, %v2110
    %v2112 = vsel %vm2111, 0, %v2110
    %v2113 = vsub.s32 32, %v2112
    %v2114 = vshll.u32 %v2105, %v2112
    %v2115 = vshrl.u32 %v2097, %v2113
    %v2116 = vor.u32 %v2114, %v2115
    %v2117 = vsub.s32 4294967266, %v2112
    %v2118 = vadd.s32 %v2117, 127
    %v2119 = vshll.u32 %v2118, 23
    %v2120 = vor.u32 4788187, %v2119
    %v2121 = vand.u32 2147483647, %v2120
    %v2123 = vcvt.s32.f32 %v2116
    %v2124 = vmul.f32 %v2123, %v2121
    %v2125 = vxor.u32 %v2124, 2147483648
    %v2126 = vsel %vm2043, %v2125, %v2124
    %v2127 = vsub.s32 4, %v2103
    %v2128 = vsel %vm2043, %v2127, %v2103
    %v2129 = vsel %vm2042, %v1935, %v2126
    %v2130 = vsel %vm2042, 0, %v2128
    %v2131 = vcosq.f32.pop %v2129
    %v2132 = vsinq.f32.pop %v2129
    %vm2133 = vweird.f32 %v1935
    %v2134 = vadd.s32 %v2130, 3
    %v2135 = vand.u32 %v2134, 3
    %vm2136 = vcmp.lt.s32.totalorder %v2135, 2
    %vm2137 = vcmp.eq.s32.totalorder %v2135, 0
    %v2138 = vxor.u32 %v2132, 2147483648
    %v2139 = vsel %vm2137, %v2131, %v2138
    %vm2140 = vcmp.eq.s32.totalorder %v2135, 2
    %v2141 = vxor.u32 %v2131, 2147483648
    %v2142 = vsel %vm2140, %v2141, %v2132
    %v2143 = vsel %vm2136, %v2139, %v2142
    %v2144 = vsel %vm2133, nan, %v2143
    %v2145 = vand.u32 2147483647, %v1936
    %vm2146 = vcmp.le.f32.partialorder %v2145, 0.7853982
    %vm2147 = vcmp.lt.s32.totalorder %v1936, 0
    %v2148 = vand.u32 %v1936, 2139095040
    %v2149 = vshrl.u32 %v2148, 23
    %v2150 = vsub.s32 %v2149, 127
    %v2151 = vand.u32 2147483647, %v1936
    %v2152 = vand.u32 %v2151, 8388607
    %v2153 = vor.u32 %v2152, 8388608
    %v2154 = vsub.s32 0, %v2153
    %v2155 = vadd.s32 %v2150, 1
    %vm2156 = vcmp.gt.s32.totalorder %v2155, 0
    %v2157 = vsel %vm2156, %v2155, 0
    %v2158 = vshrl.u32 %v2157, 5
    %v2159 = vand.u32 %v2157, 31
    %v2160 = vsub.s32 32, %v2159
    %v2161 = vshrl.u32 683565275, %v2160
    %v2162 = vshll.u32 683565275, %v2159
    %v2163 = vshrl.u32 2475754826, %v2160
    %v2164 = vor.u32 %v2162, %v2163
    %v2165 = vshll.u32 2475754826, %v2159
    %v2166 = vshrl.u32 2131351028, %v2160
    %v2167 = vor.u32 %v2165, %v2166
    %v2168 = vshll.u32 2131351028, %v2159
    %v2169 = vshrl.u32 2102212464, %v2160
    %v2170 = vor.u32 %v2168, %v2169
    %v2171 = vshll.u32 2102212464, %v2159
    %v2172 = vshrl.u32 920167782, %v2160
    %v2173 = vor.u32 %v2171, %v2172
    %v2174 = vshll.u32 920167782, %v2159
    %v2175 = vshrl.u32 1326507024, %v2160
    %v2176 = vor.u32 %v2174, %v2175
    %vm2177 = vcmp.lt.s32.totalorder %v2158, 1
    %vm2178 = vcmp.lt.s32.totalorder %v2158, 2
    %vm2179 = vcmp.lt.s32.totalorder %v2158, 3
    %vm2180 = vcmp.lt.s32.totalorder %v2158, 4
    %v2181 = vsel %vm2177, %v2161, %v2164
    %v2182 = vsel %vm2180, %v2170, 2102212464
    %v2183 = vsel %vm2179, %v2167, %v2182
    %v2184 = vsel %vm2178, %v2181, %v2183
    %v2185 = vsel %vm2177, %v2164, %v2167
    %v2186 = vsel %vm2180, %v2173, 920167782
    %v2187 = vsel %vm2179, %v2170, %v2186
    %v2188 = vsel %vm2178, %v2185, %v2187
    %v2189 = vsel %vm2177, %v2167, %v2170
    %v2190 = vsel %vm2180, %v2176, 1326507024
    %v2191 = vsel %vm2179, %v2173, %v2190
    %v2192 = vsel %vm2178, %v2189, %v2191
    %v2193 = vshll.u32 %v2153, 8
    %v2194 = vmul.u32.u64.compose %v2193, %v2192
    %v2195 = vextract.low.u32 %v2194
    %v2196 = vextract.high.u32 %v2194
    %v2197 = vmul.u32.u64.compose %v2193, %v2188
    %v2198 = vextract.low.u32 %v2197
    %v2199 = vextract.high.u32 %v2197
    %v2200 = vmul.u32 %v2193, %v2184
    %v2201 = vadd.s32 %v2196, %v2198
    %vm2202 = vc.u32 %v2196, %v2198
    %v2203 = vadd.s32 %v2199, 1
    %v2204 = vsel %vm2202, %v2203, %v2199
    %v2205 = vadd.s32 %v2200, %v2204
    %v2206 = vadd.s32 %v2205, 536870912
    %v2207 = vshrl.u32 %v2206, 30
    %v2208 = vshll.u32 %v2207, 30
    %v2209 = vsub.s32 %v2205, %v2208
    %vm2210 = vcmp.lt.s32.totalorder %v2209, 0
    %v2211 = vsub.s32 0, %v2209
    %v2212 = vsel %vm2210, %v2211, %v2209
    %v2213 = vclz %v2212
    %v2214 = vsub.s32 %v2213, 2
    %vm2215 = vcmp.gt.s32.totalorder 0, %v2214
    %v2216 = vsel %vm2215, 0, %v2214
    %v2217 = vsub.s32 32, %v2216
    %v2218 = vshll.u32 %v2209, %v2216
    %v2219 = vshrl.u32 %v2201, %v2217
    %v2220 = vor.u32 %v2218, %v2219
    %v2221 = vsub.s32 4294967266, %v2216
    %v2222 = vadd.s32 %v2221, 127
    %v2223 = vshll.u32 %v2222, 23
    %v2224 = vor.u32 4788187, %v2223
    %v2225 = vand.u32 2147483647, %v2224
    %v2227 = vcvt.s32.f32 %v2220
    %v2228 = vmul.f32 %v2227, %v2225
    %v2229 = vxor.u32 %v2228, 2147483648
    %v2230 = vsel %vm2147, %v2229, %v2228
    %v2231 = vsub.s32 4, %v2207
    %v2232 = vsel %vm2147, %v2231, %v2207
    %v2233 = vsel %vm2146, %v1936, %v2230
    %v2234 = vsel %vm2146, 0, %v2232
    %v2235 = vcosq.f32.pop %v2233
    %v2236 = vsinq.f32.pop %v2233
    %vm2237 = vweird.f32 %v1936
    %v2238 = vadd.s32 %v2234, 3
    %v2239 = vand.u32 %v2238, 3
    %vm2240 = vcmp.lt.s32.totalorder %v2239, 2
    %vm2241 = vcmp.eq.s32.totalorder %v2239, 0
    %v2242 = vxor.u32 %v2236, 2147483648
    %v2243 = vsel %vm2241, %v2235, %v2242
    %vm2244 = vcmp.eq.s32.totalorder %v2239, 2
    %v2245 = vxor.u32 %v2235, 2147483648
    %v2246 = vsel %vm2244, %v2245, %v2236
    %v2247 = vsel %vm2240, %v2243, %v2246
    %v2248 = vsel %vm2237, nan, %v2247
    %2249 = vst.msk [vmem:[%s1 + $0x60] sm:$0xff] %vm25, %v2040
    %2250 = vst.msk [vmem:[%s1 + $0x68] sm:$0xff] %vm25, %v2144
    %2251 = vst.msk [vmem:[%s1 + $0x70] sm:$0xff] %vm25, %v2248
    %v2252 = vadd.f32 %v1934, 1.5707964
    %v2253 = vadd.f32 %v1935, 1.5707964
    %v2254 = vadd.f32 %v1936, 1.5707964
    %v2255 = vand.u32 2147483647, %v2252
    %vm2256 = vcmp.le.f32.partialorder %v2255, 0.7853982
    %vm2257 = vcmp.lt.s32.totalorder %v2252, 0
    %v2258 = vand.u32 %v2252, 2139095040
    %v2259 = vshrl.u32 %v2258, 23
    %v2260 = vsub.s32 %v2259, 127
    %v2261 = vand.u32 2147483647, %v2252
    %v2262 = vand.u32 %v2261, 8388607
    %v2263 = vor.u32 %v2262, 8388608
    %v2264 = vsub.s32 0, %v2263
    %v2265 = vadd.s32 %v2260, 1
    %vm2266 = vcmp.gt.s32.totalorder %v2265, 0
    %v2267 = vsel %vm2266, %v2265, 0
    %v2268 = vshrl.u32 %v2267, 5
    %v2269 = vand.u32 %v2267, 31
    %v2270 = vsub.s32 32, %v2269
    %v2271 = vshrl.u32 683565275, %v2270
    %v2272 = vshll.u32 683565275, %v2269
    %v2273 = vshrl.u32 2475754826, %v2270
    %v2274 = vor.u32 %v2272, %v2273
    %v2275 = vshll.u32 2475754826, %v2269
    %v2276 = vshrl.u32 2131351028, %v2270
    %v2277 = vor.u32 %v2275, %v2276
    %v2278 = vshll.u32 2131351028, %v2269
    %v2279 = vshrl.u32 2102212464, %v2270
    %v2280 = vor.u32 %v2278, %v2279
    %v2281 = vshll.u32 2102212464, %v2269
    %v2282 = vshrl.u32 920167782, %v2270
    %v2283 = vor.u32 %v2281, %v2282
    %v2284 = vshll.u32 920167782, %v2269
    %v2285 = vshrl.u32 1326507024, %v2270
    %v2286 = vor.u32 %v2284, %v2285
    %vm2287 = vcmp.lt.s32.totalorder %v2268, 1
    %vm2288 = vcmp.lt.s32.totalorder %v2268, 2
    %vm2289 = vcmp.lt.s32.totalorder %v2268, 3
    %vm2290 = vcmp.lt.s32.totalorder %v2268, 4
    %v2291 = vsel %vm2287, %v2271, %v2274
    %v2292 = vsel %vm2290, %v2280, 2102212464
    %v2293 = vsel %vm2289, %v2277, %v2292
    %v2294 = vsel %vm2288, %v2291, %v2293
    %v2295 = vsel %vm2287, %v2274, %v2277
    %v2296 = vsel %vm2290, %v2283, 920167782
    %v2297 = vsel %vm2289, %v2280, %v2296
    %v2298 = vsel %vm2288, %v2295, %v2297
    %v2299 = vsel %vm2287, %v2277, %v2280
    %v2300 = vsel %vm2290, %v2286, 1326507024
    %v2301 = vsel %vm2289, %v2283, %v2300
    %v2302 = vsel %vm2288, %v2299, %v2301
    %v2303 = vshll.u32 %v2263, 8
    %v2304 = vmul.u32.u64.compose %v2303, %v2302
    %v2305 = vextract.low.u32 %v2304
    %v2306 = vextract.high.u32 %v2304
    %v2307 = vmul.u32.u64.compose %v2303, %v2298
    %v2308 = vextract.low.u32 %v2307
    %v2309 = vextract.high.u32 %v2307
    %v2310 = vmul.u32 %v2303, %v2294
    %v2311 = vadd.s32 %v2306, %v2308
    %vm2312 = vc.u32 %v2306, %v2308
    %v2313 = vadd.s32 %v2309, 1
    %v2314 = vsel %vm2312, %v2313, %v2309
    %v2315 = vadd.s32 %v2310, %v2314
    %v2316 = vadd.s32 %v2315, 536870912
    %v2317 = vshrl.u32 %v2316, 30
    %v2318 = vshll.u32 %v2317, 30
    %v2319 = vsub.s32 %v2315, %v2318
    %vm2320 = vcmp.lt.s32.totalorder %v2319, 0
    %v2321 = vsub.s32 0, %v2319
    %v2322 = vsel %vm2320, %v2321, %v2319
    %v2323 = vclz %v2322
    %v2324 = vsub.s32 %v2323, 2
    %vm2325 = vcmp.gt.s32.totalorder 0, %v2324
    %v2326 = vsel %vm2325, 0, %v2324
    %v2327 = vsub.s32 32, %v2326
    %v2328 = vshll.u32 %v2319, %v2326
    %v2329 = vshrl.u32 %v2311, %v2327
    %v2330 = vor.u32 %v2328, %v2329
    %v2331 = vsub.s32 4294967266, %v2326
    %v2332 = vadd.s32 %v2331, 127
    %v2333 = vshll.u32 %v2332, 23
    %v2334 = vor.u32 4788187, %v2333
    %v2335 = vand.u32 2147483647, %v2334
    %v2337 = vcvt.s32.f32 %v2330
    %v2338 = vmul.f32 %v2337, %v2335
    %v2339 = vxor.u32 %v2338, 2147483648
    %v2340 = vsel %vm2257, %v2339, %v2338
    %v2341 = vsub.s32 4, %v2317
    %v2342 = vsel %vm2257, %v2341, %v2317
    %v2343 = vsel %vm2256, %v2252, %v2340
    %v2344 = vsel %vm2256, 0, %v2342
    %v2345 = vcosq.f32.pop %v2343
    %v2346 = vsinq.f32.pop %v2343
    %vm2347 = vweird.f32 %v2252
    %v2348 = vadd.s32 %v2344, 3
    %v2349 = vand.u32 %v2348, 3
    %vm2350 = vcmp.lt.s32.totalorder %v2349, 2
    %vm2351 = vcmp.eq.s32.totalorder %v2349, 0
    %v2352 = vxor.u32 %v2346, 2147483648
    %v2353 = vsel %vm2351, %v2345, %v2352
    %vm2354 = vcmp.eq.s32.totalorder %v2349, 2
    %v2355 = vxor.u32 %v2345, 2147483648
    %v2356 = vsel %vm2354, %v2355, %v2346
    %v2357 = vsel %vm2350, %v2353, %v2356
    %v2358 = vsel %vm2347, nan, %v2357
    %v2359 = vand.u32 2147483647, %v2253
    %vm2360 = vcmp.le.f32.partialorder %v2359, 0.7853982
    %vm2361 = vcmp.lt.s32.totalorder %v2253, 0
    %v2362 = vand.u32 %v2253, 2139095040
    %v2363 = vshrl.u32 %v2362, 23
    %v2364 = vsub.s32 %v2363, 127
    %v2365 = vand.u32 2147483647, %v2253
    %v2366 = vand.u32 %v2365, 8388607
    %v2367 = vor.u32 %v2366, 8388608
    %v2368 = vsub.s32 0, %v2367
    %v2369 = vadd.s32 %v2364, 1
    %vm2370 = vcmp.gt.s32.totalorder %v2369, 0
    %v2371 = vsel %vm2370, %v2369, 0
    %v2372 = vshrl.u32 %v2371, 5
    %v2373 = vand.u32 %v2371, 31
    %v2374 = vsub.s32 32, %v2373
    %v2375 = vshrl.u32 683565275, %v2374
    %v2376 = vshll.u32 683565275, %v2373
    %v2377 = vshrl.u32 2475754826, %v2374
    %v2378 = vor.u32 %v2376, %v2377
    %v2379 = vshll.u32 2475754826, %v2373
    %v2380 = vshrl.u32 2131351028, %v2374
    %v2381 = vor.u32 %v2379, %v2380
    %v2382 = vshll.u32 2131351028, %v2373
    %v2383 = vshrl.u32 2102212464, %v2374
    %v2384 = vor.u32 %v2382, %v2383
    %v2385 = vshll.u32 2102212464, %v2373
    %v2386 = vshrl.u32 920167782, %v2374
    %v2387 = vor.u32 %v2385, %v2386
    %v2388 = vshll.u32 920167782, %v2373
    %v2389 = vshrl.u32 1326507024, %v2374
    %v2390 = vor.u32 %v2388, %v2389
    %vm2391 = vcmp.lt.s32.totalorder %v2372, 1
    %vm2392 = vcmp.lt.s32.totalorder %v2372, 2
    %vm2393 = vcmp.lt.s32.totalorder %v2372, 3
    %vm2394 = vcmp.lt.s32.totalorder %v2372, 4
    %v2395 = vsel %vm2391, %v2375, %v2378
    %v2396 = vsel %vm2394, %v2384, 2102212464
    %v2397 = vsel %vm2393, %v2381, %v2396
    %v2398 = vsel %vm2392, %v2395, %v2397
    %v2399 = vsel %vm2391, %v2378, %v2381
    %v2400 = vsel %vm2394, %v2387, 920167782
    %v2401 = vsel %vm2393, %v2384, %v2400
    %v2402 = vsel %vm2392, %v2399, %v2401
    %v2403 = vsel %vm2391, %v2381, %v2384
    %v2404 = vsel %vm2394, %v2390, 1326507024
    %v2405 = vsel %vm2393, %v2387, %v2404
    %v2406 = vsel %vm2392, %v2403, %v2405
    %v2407 = vshll.u32 %v2367, 8
    %v2408 = vmul.u32.u64.compose %v2407, %v2406
    %v2409 = vextract.low.u32 %v2408
    %v2410 = vextract.high.u32 %v2408
    %v2411 = vmul.u32.u64.compose %v2407, %v2402
    %v2412 = vextract.low.u32 %v2411
    %v2413 = vextract.high.u32 %v2411
    %v2414 = vmul.u32 %v2407, %v2398
    %v2415 = vadd.s32 %v2410, %v2412
    %vm2416 = vc.u32 %v2410, %v2412
    %v2417 = vadd.s32 %v2413, 1
    %v2418 = vsel %vm2416, %v2417, %v2413
    %v2419 = vadd.s32 %v2414, %v2418
    %v2420 = vadd.s32 %v2419, 536870912
    %v2421 = vshrl.u32 %v2420, 30
    %v2422 = vshll.u32 %v2421, 30
    %v2423 = vsub.s32 %v2419, %v2422
    %vm2424 = vcmp.lt.s32.totalorder %v2423, 0
    %v2425 = vsub.s32 0, %v2423
    %v2426 = vsel %vm2424, %v2425, %v2423
    %v2427 = vclz %v2426
    %v2428 = vsub.s32 %v2427, 2
    %vm2429 = vcmp.gt.s32.totalorder 0, %v2428
    %v2430 = vsel %vm2429, 0, %v2428
    %v2431 = vsub.s32 32, %v2430
    %v2432 = vshll.u32 %v2423, %v2430
    %v2433 = vshrl.u32 %v2415, %v2431
    %v2434 = vor.u32 %v2432, %v2433
    %v2435 = vsub.s32 4294967266, %v2430
    %v2436 = vadd.s32 %v2435, 127
    %v2437 = vshll.u32 %v2436, 23
    %v2438 = vor.u32 4788187, %v2437
    %v2439 = vand.u32 2147483647, %v2438
    %v2441 = vcvt.s32.f32 %v2434
    %v2442 = vmul.f32 %v2441, %v2439
    %v2443 = vxor.u32 %v2442, 2147483648
    %v2444 = vsel %vm2361, %v2443, %v2442
    %v2445 = vsub.s32 4, %v2421
    %v2446 = vsel %vm2361, %v2445, %v2421
    %v2447 = vsel %vm2360, %v2253, %v2444
    %v2448 = vsel %vm2360, 0, %v2446
    %v2449 = vcosq.f32.pop %v2447
    %v2450 = vsinq.f32.pop %v2447
    %vm2451 = vweird.f32 %v2253
    %v2452 = vadd.s32 %v2448, 3
    %v2453 = vand.u32 %v2452, 3
    %vm2454 = vcmp.lt.s32.totalorder %v2453, 2
    %vm2455 = vcmp.eq.s32.totalorder %v2453, 0
    %v2456 = vxor.u32 %v2450, 2147483648
    %v2457 = vsel %vm2455, %v2449, %v2456
    %vm2458 = vcmp.eq.s32.totalorder %v2453, 2
    %v2459 = vxor.u32 %v2449, 2147483648
    %v2460 = vsel %vm2458, %v2459, %v2450
    %v2461 = vsel %vm2454, %v2457, %v2460
    %v2462 = vsel %vm2451, nan, %v2461
    %v2463 = vand.u32 2147483647, %v2254
    %vm2464 = vcmp.le.f32.partialorder %v2463, 0.7853982
    %vm2465 = vcmp.lt.s32.totalorder %v2254, 0
    %v2466 = vand.u32 %v2254, 2139095040
    %v2467 = vshrl.u32 %v2466, 23
    %v2468 = vsub.s32 %v2467, 127
    %v2469 = vand.u32 2147483647, %v2254
    %v2470 = vand.u32 %v2469, 8388607
    %v2471 = vor.u32 %v2470, 8388608
    %v2472 = vsub.s32 0, %v2471
    %v2473 = vadd.s32 %v2468, 1
    %vm2474 = vcmp.gt.s32.totalorder %v2473, 0
    %v2475 = vsel %vm2474, %v2473, 0
    %v2476 = vshrl.u32 %v2475, 5
    %v2477 = vand.u32 %v2475, 31
    %v2478 = vsub.s32 32, %v2477
    %v2479 = vshrl.u32 683565275, %v2478
    %v2480 = vshll.u32 683565275, %v2477
    %v2481 = vshrl.u32 2475754826, %v2478
    %v2482 = vor.u32 %v2480, %v2481
    %v2483 = vshll.u32 2475754826, %v2477
    %v2484 = vshrl.u32 2131351028, %v2478
    %v2485 = vor.u32 %v2483, %v2484
    %v2486 = vshll.u32 2131351028, %v2477
    %v2487 = vshrl.u32 2102212464, %v2478
    %v2488 = vor.u32 %v2486, %v2487
    %v2489 = vshll.u32 2102212464, %v2477
    %v2490 = vshrl.u32 920167782, %v2478
    %v2491 = vor.u32 %v2489, %v2490
    %v2492 = vshll.u32 920167782, %v2477
    %v2493 = vshrl.u32 1326507024, %v2478
    %v2494 = vor.u32 %v2492, %v2493
    %vm2495 = vcmp.lt.s32.totalorder %v2476, 1
    %vm2496 = vcmp.lt.s32.totalorder %v2476, 2
    %vm2497 = vcmp.lt.s32.totalorder %v2476, 3
    %vm2498 = vcmp.lt.s32.totalorder %v2476, 4
    %v2499 = vsel %vm2495, %v2479, %v2482
    %v2500 = vsel %vm2498, %v2488, 2102212464
    %v2501 = vsel %vm2497, %v2485, %v2500
    %v2502 = vsel %vm2496, %v2499, %v2501
    %v2503 = vsel %vm2495, %v2482, %v2485
    %v2504 = vsel %vm2498, %v2491, 920167782
    %v2505 = vsel %vm2497, %v2488, %v2504
    %v2506 = vsel %vm2496, %v2503, %v2505
    %v2507 = vsel %vm2495, %v2485, %v2488
    %v2508 = vsel %vm2498, %v2494, 1326507024
    %v2509 = vsel %vm2497, %v2491, %v2508
    %v2510 = vsel %vm2496, %v2507, %v2509
    %v2511 = vshll.u32 %v2471, 8
    %v2512 = vmul.u32.u64.compose %v2511, %v2510
    %v2513 = vextract.low.u32 %v2512
    %v2514 = vextract.high.u32 %v2512
    %v2515 = vmul.u32.u64.compose %v2511, %v2506
    %v2516 = vextract.low.u32 %v2515
    %v2517 = vextract.high.u32 %v2515
    %v2518 = vmul.u32 %v2511, %v2502
    %v2519 = vadd.s32 %v2514, %v2516
    %vm2520 = vc.u32 %v2514, %v2516
    %v2521 = vadd.s32 %v2517, 1
    %v2522 = vsel %vm2520, %v2521, %v2517
    %v2523 = vadd.s32 %v2518, %v2522
    %v2524 = vadd.s32 %v2523, 536870912
    %v2525 = vshrl.u32 %v2524, 30
    %v2526 = vshll.u32 %v2525, 30
    %v2527 = vsub.s32 %v2523, %v2526
    %vm2528 = vcmp.lt.s32.totalorder %v2527, 0
    %v2529 = vsub.s32 0, %v2527
    %v2530 = vsel %vm2528, %v2529, %v2527
    %v2531 = vclz %v2530
    %v2532 = vsub.s32 %v2531, 2
    %vm2533 = vcmp.gt.s32.totalorder 0, %v2532
    %v2534 = vsel %vm2533, 0, %v2532
    %v2535 = vsub.s32 32, %v2534
    %v2536 = vshll.u32 %v2527, %v2534
    %v2537 = vshrl.u32 %v2519, %v2535
    %v2538 = vor.u32 %v2536, %v2537
    %v2539 = vsub.s32 4294967266, %v2534
    %v2540 = vadd.s32 %v2539, 127
    %v2541 = vshll.u32 %v2540, 23
    %v2542 = vor.u32 4788187, %v2541
    %v2543 = vand.u32 2147483647, %v2542
    %v2545 = vcvt.s32.f32 %v2538
    %v2546 = vmul.f32 %v2545, %v2543
    %v2547 = vxor.u32 %v2546, 2147483648
    %v2548 = vsel %vm2465, %v2547, %v2546
    %v2549 = vsub.s32 4, %v2525
    %v2550 = vsel %vm2465, %v2549, %v2525
    %v2551 = vsel %vm2464, %v2254, %v2548
    %v2552 = vsel %vm2464, 0, %v2550
    %v2553 = vcosq.f32.pop %v2551
    %v2554 = vsinq.f32.pop %v2551
    %vm2555 = vweird.f32 %v2254
    %v2556 = vadd.s32 %v2552, 3
    %v2557 = vand.u32 %v2556, 3
    %vm2558 = vcmp.lt.s32.totalorder %v2557, 2
    %vm2559 = vcmp.eq.s32.totalorder %v2557, 0
    %v2560 = vxor.u32 %v2554, 2147483648
    %v2561 = vsel %vm2559, %v2553, %v2560
    %vm2562 = vcmp.eq.s32.totalorder %v2557, 2
    %v2563 = vxor.u32 %v2553, 2147483648
    %v2564 = vsel %vm2562, %v2563, %v2554
    %v2565 = vsel %vm2558, %v2561, %v2564
    %v2566 = vsel %vm2555, nan, %v2565
    %2567 = vst.msk [vmem:[%s1 + $0xc0] sm:$0xff] %vm25, %v2358
    %2568 = vst.msk [vmem:[%s1 + $0xc8] sm:$0xff] %vm25, %v2462
    %2569 = vst.msk [vmem:[%s1 + $0xd0] sm:$0xff] %vm25, %v2566
    // Predicated region
    $region10: #{tpu_custom_call.1} parent=1 // pred_check
      _
    $region11: #{tpu_custom_call.1} parent=1 // pred_check_branch
      %2571 = sbr.rel (0) target = $region13
    $region12: #{tpu_custom_call.1} parent=1 // pred_region
      _
    $region13: #{tpu_custom_call.1} parent=1 // pred_fallthru
      _
    // Predicated region
    $region14: #{tpu_custom_call.1} parent=1 // pred_check
      _
    $region15: #{tpu_custom_call.1} parent=1 // pred_check_branch
      %2573 = sbr.rel (0) target = $region17
    $region16: #{tpu_custom_call.1} parent=1 // pred_region
      _
    $region17: #{tpu_custom_call.1} parent=1 // pred_fallthru
      _
    %2574 = vsyncpa [#allocation3], 1

</llo_original>
